<compile_context>
chip_gen: v7x
topology: tpu7x:2x2x1
jax: 0.10.0
libtpu: 0.0.40
codegen_flags: <defaults>
</compile_context>

<pallas_src>
import functools

import jax
import jax.numpy as jnp
from jax import lax
from jax.experimental import pallas as pl
from jax.experimental.pallas import tpu as pltpu

NUM_HEADS = 4
EMBED_DIM = 64
HEAD_DIM = EMBED_DIM // NUM_HEADS


# --------------------------- Fused forward kernel --------------------------- #
def _fused_rotary_mha_kernel(x_ref, wqkv_ref, bqkv_ref, wo_ref, bo_ref,
                             cos_ref, sin_ref, pswap_ref, o_ref,
                             *, num_heads, head_dim):
    E = num_heads * head_dim
    scale = 1.0 / (head_dim ** 0.5)

    x = x_ref[...].astype(jnp.float32)                       # (L, E)

    # Fused QKV projection: (L, E) @ (E, 3E) -> (L, 3E), lane-dense result.
    qkv = jnp.dot(x, wqkv_ref[...],
                  preferred_element_type=jnp.float32) + bqkv_ref[...]
    q = qkv[:, :E]
    k = qkv[:, E:2 * E]
    v = qkv[:, 2 * E:]

    # Interleaved-pair rotary embedding, fully in-kernel.
    cos = cos_ref[...]          # (L, E): [c0,c0,c1,c1,...]
    sin = sin_ref[...]          # (L, E): [-s0,+s0,-s1,+s1,...]  (sign folded)
    pswap = pswap_ref[...]      # (E, E): permutation, swaps adjacent pairs

    def rope(t):
        swz = jnp.dot(t, pswap, preferred_element_type=jnp.float32)  # t[:, j^1]
        return t * cos + swz * sin

    q = rope(q)
    k = rope(k)

    # Multi-head attention, all heads inside this one kernel invocation.
    outs = []
    for h in range(num_heads):
        sl = slice(h * head_dim, (h + 1) * head_dim)
        qh, kh, vh = q[:, sl], k[:, sl], v[:, sl]             # (L, HD)
        s = lax.dot_general(qh, kh, (((1,), (1,)), ((), ())),
                            preferred_element_type=jnp.float32) * scale  # (L, L)
        s = s - jnp.max(s, axis=-1, keepdims=True)
        p = jnp.exp(s)
        p = p * pl.reciprocal(jnp.sum(p, axis=-1, keepdims=True), approx=False)
        outs.append(jnp.dot(p, vh, preferred_element_type=jnp.float32))
    att = jnp.concatenate(outs, axis=1)                        # (L, E)

    # Output projection.
    out = jnp.dot(att, wo_ref[...],
                  preferred_element_type=jnp.float32) + bo_ref[...]
    o_ref[...] = out.astype(o_ref.dtype)


def rotary_mha_forward(x, rotary_freqs, params, *, num_heads=NUM_HEADS):
    B, L, E = x.shape
    H = num_heads
    HD = E // H
    assert E % H == 0 and HD % 2 == 0, "embed_dim must split into even-dim heads"
    assert rotary_freqs.shape == (L, E // 2)

    # --- glue (done once per call): pack torch-convention weights ---------- #
    wqkv_t = jnp.concatenate(
        [params["wq"].T, params["wk"].T, params["wv"].T], axis=1)      # (E, 3E)
    bqkv = jnp.concatenate(
        [params["bq"], params["bk"], params["bv"]]).reshape(1, 3 * E)  # (1, 3E)
    wo_t = jnp.transpose(params["wo"])                                  # (E, E)
    bo = params["bo"].reshape(1, E)                                     # (1, E)

    # --- glue: pair-expanded cos / sign-folded sin tables, shape (L, E) ----- #
    cos_e = jnp.repeat(jnp.cos(rotary_freqs), 2, axis=-1).astype(jnp.float32)
    sign = jnp.tile(jnp.array([-1.0, 1.0], dtype=jnp.float32), E // 2)
    sin_e = (jnp.repeat(jnp.sin(rotary_freqs), 2, axis=-1)
             * sign[None, :]).astype(jnp.float32)

    # --- glue: constant pair-swap permutation matrix P[i, j] = (j == i^1) --- #
    idx = jnp.arange(E, dtype=jnp.int32)
    pswap = ((idx[:, None] ^ 1) == idx[None, :]).astype(jnp.float32)    # (E, E)

    kernel = functools.partial(_fused_rotary_mha_kernel,
                               num_heads=H, head_dim=HD)

    batch_spec = pl.BlockSpec((None, L, E), lambda b: (b, 0, 0))

    def full_spec(shape):
        return pl.BlockSpec(shape, lambda b, _n=len(shape): (0,) * _n)

    return pl.pallas_call(
        kernel,
        out_shape=jax.ShapeDtypeStruct((B, L, E), x.dtype),
        grid=(B,),
        in_specs=[
            batch_spec,                 # x
            full_spec((E, 3 * E)),      # wqkv
            full_spec((1, 3 * E)),      # bqkv
            full_spec((E, E)),          # wo
            full_spec((1, E)),          # bo
            full_spec((L, E)),          # cos (pair-expanded)
            full_spec((L, E)),          # sin (sign-folded)
            full_spec((E, E)),          # pair-swap permutation
        ],
        out_specs=batch_spec,
        compiler_params=pltpu.CompilerParams(
            dimension_semantics=("parallel",)),   # v7x: one batch elem per TC
    )(x, wqkv_t, bqkv, wo_t, bo, cos_e, sin_e, pswap)


# ------------------------------ Pure-JAX ref -------------------------------- #
def ref_forward(x, rotary_freqs, params):
    B, L, E = x.shape
    H, HD = NUM_HEADS, HEAD_DIM
    q = x @ params["wq"].T + params["bq"]
    k = x @ params["wk"].T + params["bk"]
    v = x @ params["wv"].T + params["bv"]

    c = jnp.cos(rotary_freqs)[None]
    s = jnp.sin(rotary_freqs)[None]

    def rope(t):
        te = t.reshape(B, L, E // 2, 2)[..., 0]
        to = t.reshape(B, L, E // 2, 2)[..., 1]
        re = te * c - to * s
        ro = te * s + to * c
        return jnp.stack([re, ro], axis=-1).reshape(B, L, E)

    q, k = rope(q), rope(k)
    qh = q.reshape(B, L, H, HD).transpose(0, 2, 1, 3)
    kh = k.reshape(B, L, H, HD).transpose(0, 2, 1, 3)
    vh = v.reshape(B, L, H, HD).transpose(0, 2, 1, 3)
    scores = jnp.einsum("bhqd,bhkd->bhqk", qh, kh) / (HD ** 0.5)
    p = jax.nn.softmax(scores, axis=-1)
    o = jnp.einsum("bhqk,bhkd->bhqd", p, vh)
    o = o.transpose(0, 2, 1, 3).reshape(B, L, E)
    return o @ params["wo"].T + params["bo"]


# ----------------------------------- Main ----------------------------------- #
if __name__ == "__main__":
    B, L, E = 2, 8, EMBED_DIM
    key = jax.random.PRNGKey(0)
    keys = jax.random.split(key, 10)

    scale = 1.0 / (E ** 0.5)
    params = {
        "wq": jax.random.uniform(keys[0], (E, E), jnp.float32, -scale, scale),
        "bq": jax.random.uniform(keys[1], (E,), jnp.float32, -scale, scale),
        "wk": jax.random.uniform(keys[2], (E, E), jnp.float32, -scale, scale),
        "bk": jax.random.uniform(keys[3], (E,), jnp.float32, -scale, scale),
        "wv": jax.random.uniform(keys[4], (E, E), jnp.float32, -scale, scale),
        "bv": jax.random.uniform(keys[5], (E,), jnp.float32, -scale, scale),
        "wo": jax.random.uniform(keys[6], (E, E), jnp.float32, -scale, scale),
        "bo": jax.random.uniform(keys[7], (E,), jnp.float32, -scale, scale),
    }

    x = jax.random.normal(keys[8], (B, L, E), jnp.float32)

    # rotary angle table: theta[l, i] = l / 10000^(2i/E), shape (L, E//2)
    inv_freq = 1.0 / (10000.0 ** (jnp.arange(0, E, 2, dtype=jnp.float32) / E))
    rotary_freqs = jnp.arange(L, dtype=jnp.float32)[:, None] * inv_freq[None, :]

    out = rotary_mha_forward(x, rotary_freqs, params)
    out = jax.block_until_ready(out)

    ref = ref_forward(x, rotary_freqs, params)
    assert out.shape == (B, L, E)
    assert jnp.allclose(out, ref, rtol=2e-4, atol=2e-4), "mismatch vs reference"

    print("KERNEL_OK")
</pallas_src>

<mosaic_0001>
module attributes {stable_mosaic.version = 11 : i64} {
  func.func @_fused_rotary_mha_kernel(%arg0: i32, %arg1: memref<1x8x64xf32, #tpu.memory_space<vmem>>, %arg2: memref<64x192xf32, #tpu.memory_space<vmem>>, %arg3: memref<1x192xf32, #tpu.memory_space<vmem>>, %arg4: memref<64x64xf32, #tpu.memory_space<vmem>>, %arg5: memref<1x64xf32, #tpu.memory_space<vmem>>, %arg6: memref<8x64xf32, #tpu.memory_space<vmem>>, %arg7: memref<8x64xf32, #tpu.memory_space<vmem>>, %arg8: memref<64x64xf32, #tpu.memory_space<vmem>>, %arg9: memref<1x8x64xf32, #tpu.memory_space<vmem>>) attributes {dimension_semantics = [#tpu.dimension_semantics<parallel>], iteration_bounds = array<i64: 2>, scalar_prefetch = 0 : i64, scratch_operands = 0 : i64, tpu.core_type = #tpu.core_type<tc>, window_params = [{transform_indices = @transform_0, window_bounds = array<i64: 1, 8, 64>}, {pipeline_mode = #tpu.pipeline_mode<synchronous>, transform_indices = @transform_1, window_bounds = array<i64: 64, 192>}, {pipeline_mode = #tpu.pipeline_mode<synchronous>, transform_indices = @transform_2, window_bounds = array<i64: 1, 192>}, {pipeline_mode = #tpu.pipeline_mode<synchronous>, transform_indices = @transform_3, window_bounds = array<i64: 64, 64>}, {pipeline_mode = #tpu.pipeline_mode<synchronous>, transform_indices = @transform_4, window_bounds = array<i64: 1, 64>}, {pipeline_mode = #tpu.pipeline_mode<synchronous>, transform_indices = @transform_5, window_bounds = array<i64: 8, 64>}, {pipeline_mode = #tpu.pipeline_mode<synchronous>, transform_indices = @transform_6, window_bounds = array<i64: 8, 64>}, {pipeline_mode = #tpu.pipeline_mode<synchronous>, transform_indices = @transform_7, window_bounds = array<i64: 64, 64>}, {transform_indices = @transform_8, window_bounds = array<i64: 1, 8, 64>}]} {
    %c0 = arith.constant 0 : index
    %c0_0 = arith.constant 0 : index
    %c0_1 = arith.constant 0 : index
    %0 = vector.load %arg1[%c0, %c0_0, %c0_1] : memref<1x8x64xf32, #tpu.memory_space<vmem>>, vector<1x8x64xf32>
    %1 = vector.shape_cast %0 : vector<1x8x64xf32> to vector<8x64xf32>
    %c0_2 = arith.constant 0 : index
    %c0_3 = arith.constant 0 : index
    %2 = vector.load %arg2[%c0_2, %c0_3] : memref<64x192xf32, #tpu.memory_space<vmem>>, vector<64x192xf32>
    %cst = arith.constant dense<0.000000e+00> : vector<8x192xf32>
    %3 = tpu.matmul %1, %2, %cst {dimension_numbers = #tpu.dot_dimension_numbers<[1], [0], [0], [1], [0, 0, 1, 1], [], []>} : vector<8x64xf32>, vector<64x192xf32>, vector<8x192xf32> -> vector<8x192xf32>
    %c0_4 = arith.constant 0 : index
    %c0_5 = arith.constant 0 : index
    %4 = vector.load %arg3[%c0_4, %c0_5] : memref<1x192xf32, #tpu.memory_space<vmem>>, vector<1x192xf32>
    %5 = vector.broadcast %4 : vector<1x192xf32> to vector<8x192xf32>
    %6 = arith.addf %3, %5 : vector<8x192xf32>
    %7 = vector.extract_strided_slice %6 {offsets = [0, 0], sizes = [8, 64], strides = [1, 1]} : vector<8x192xf32> to vector<8x64xf32>
    %8 = vector.extract_strided_slice %6 {offsets = [0, 64], sizes = [8, 64], strides = [1, 1]} : vector<8x192xf32> to vector<8x64xf32>
    %9 = vector.extract_strided_slice %6 {offsets = [0, 128], sizes = [8, 64], strides = [1, 1]} : vector<8x192xf32> to vector<8x64xf32>
    %c0_6 = arith.constant 0 : index
    %c0_7 = arith.constant 0 : index
    %10 = vector.load %arg6[%c0_6, %c0_7] : memref<8x64xf32, #tpu.memory_space<vmem>>, vector<8x64xf32>
    %c0_8 = arith.constant 0 : index
    %c0_9 = arith.constant 0 : index
    %11 = vector.load %arg7[%c0_8, %c0_9] : memref<8x64xf32, #tpu.memory_space<vmem>>, vector<8x64xf32>
    %c0_10 = arith.constant 0 : index
    %c0_11 = arith.constant 0 : index
    %12 = vector.load %arg8[%c0_10, %c0_11] : memref<64x64xf32, #tpu.memory_space<vmem>>, vector<64x64xf32>
    %cst_12 = arith.constant dense<0.000000e+00> : vector<8x64xf32>
    %13 = tpu.matmul %7, %12, %cst_12 {dimension_numbers = #tpu.dot_dimension_numbers<[1], [0], [0], [1], [0, 0, 1, 1], [], []>} : vector<8x64xf32>, vector<64x64xf32>, vector<8x64xf32> -> vector<8x64xf32>
    %14 = arith.mulf %7, %10 : vector<8x64xf32>
    %15 = arith.mulf %13, %11 : vector<8x64xf32>
    %16 = arith.addf %14, %15 : vector<8x64xf32>
    %cst_13 = arith.constant dense<0.000000e+00> : vector<8x64xf32>
    %17 = tpu.matmul %8, %12, %cst_13 {dimension_numbers = #tpu.dot_dimension_numbers<[1], [0], [0], [1], [0, 0, 1, 1], [], []>} : vector<8x64xf32>, vector<64x64xf32>, vector<8x64xf32> -> vector<8x64xf32>
    %18 = arith.mulf %8, %10 : vector<8x64xf32>
    %19 = arith.mulf %17, %11 : vector<8x64xf32>
    %20 = arith.addf %18, %19 : vector<8x64xf32>
    %21 = vector.extract_strided_slice %16 {offsets = [0, 0], sizes = [8, 16], strides = [1, 1]} : vector<8x64xf32> to vector<8x16xf32>
    %22 = vector.extract_strided_slice %20 {offsets = [0, 0], sizes = [8, 16], strides = [1, 1]} : vector<8x64xf32> to vector<8x16xf32>
    %23 = vector.extract_strided_slice %9 {offsets = [0, 0], sizes = [8, 16], strides = [1, 1]} : vector<8x64xf32> to vector<8x16xf32>
    %cst_14 = arith.constant dense<0.000000e+00> : vector<8x8xf32>
    %24 = tpu.matmul %21, %22, %cst_14 {dimension_numbers = #tpu.dot_dimension_numbers<[1], [1], [0], [0], [0, 0, 1, 0], [], []>} : vector<8x16xf32>, vector<8x16xf32>, vector<8x8xf32> -> vector<8x8xf32>
    %cst_15 = arith.constant 2.500000e-01 : f32
    %25 = vector.broadcast %cst_15 : f32 to vector<8x8xf32>
    %26 = arith.mulf %24, %25 : vector<8x8xf32>
    %cst_16 = arith.constant dense<0xFF800000> : vector<8xf32>
    %27 = vector.multi_reduction <maximumf>, %26, %cst_16 [1] : vector<8x8xf32> to vector<8xf32>
    %28 = vector.shape_cast %27 : vector<8xf32> to vector<8x1xf32>
    %29 = vector.broadcast %28 : vector<8x1xf32> to vector<8x8xf32>
    %30 = arith.subf %26, %29 : vector<8x8xf32>
    %31 = math.exp %30 : vector<8x8xf32>
    %cst_17 = arith.constant dense<0.000000e+00> : vector<8xf32>
    %32 = vector.multi_reduction <add>, %31, %cst_17 [1] : vector<8x8xf32> to vector<8xf32>
    %33 = vector.shape_cast %32 : vector<8xf32> to vector<8x1xf32>
    %34 = tpu.reciprocal %33 : vector<8x1xf32> -> vector<8x1xf32>
    %35 = vector.broadcast %34 : vector<8x1xf32> to vector<8x8xf32>
    %36 = arith.mulf %31, %35 : vector<8x8xf32>
    %cst_18 = arith.constant dense<0.000000e+00> : vector<8x16xf32>
    %37 = tpu.matmul %36, %23, %cst_18 {dimension_numbers = #tpu.dot_dimension_numbers<[1], [0], [0], [1], [0, 0, 1, 1], [], []>} : vector<8x8xf32>, vector<8x16xf32>, vector<8x16xf32> -> vector<8x16xf32>
    %38 = vector.extract_strided_slice %16 {offsets = [0, 16], sizes = [8, 16], strides = [1, 1]} : vector<8x64xf32> to vector<8x16xf32>
    %39 = vector.extract_strided_slice %20 {offsets = [0, 16], sizes = [8, 16], strides = [1, 1]} : vector<8x64xf32> to vector<8x16xf32>
    %40 = vector.extract_strided_slice %9 {offsets = [0, 16], sizes = [8, 16], strides = [1, 1]} : vector<8x64xf32> to vector<8x16xf32>
    %cst_19 = arith.constant dense<0.000000e+00> : vector<8x8xf32>
    %41 = tpu.matmul %38, %39, %cst_19 {dimension_numbers = #tpu.dot_dimension_numbers<[1], [1], [0], [0], [0, 0, 1, 0], [], []>} : vector<8x16xf32>, vector<8x16xf32>, vector<8x8xf32> -> vector<8x8xf32>
    %cst_20 = arith.constant 2.500000e-01 : f32
    %42 = vector.broadcast %cst_20 : f32 to vector<8x8xf32>
    %43 = arith.mulf %41, %42 : vector<8x8xf32>
    %cst_21 = arith.constant dense<0xFF800000> : vector<8xf32>
    %44 = vector.multi_reduction <maximumf>, %43, %cst_21 [1] : vector<8x8xf32> to vector<8xf32>
    %45 = vector.shape_cast %44 : vector<8xf32> to vector<8x1xf32>
    %46 = vector.broadcast %45 : vector<8x1xf32> to vector<8x8xf32>
    %47 = arith.subf %43, %46 : vector<8x8xf32>
    %48 = math.exp %47 : vector<8x8xf32>
    %cst_22 = arith.constant dense<0.000000e+00> : vector<8xf32>
    %49 = vector.multi_reduction <add>, %48, %cst_22 [1] : vector<8x8xf32> to vector<8xf32>
    %50 = vector.shape_cast %49 : vector<8xf32> to vector<8x1xf32>
    %51 = tpu.reciprocal %50 : vector<8x1xf32> -> vector<8x1xf32>
    %52 = vector.broadcast %51 : vector<8x1xf32> to vector<8x8xf32>
    %53 = arith.mulf %48, %52 : vector<8x8xf32>
    %cst_23 = arith.constant dense<0.000000e+00> : vector<8x16xf32>
    %54 = tpu.matmul %53, %40, %cst_23 {dimension_numbers = #tpu.dot_dimension_numbers<[1], [0], [0], [1], [0, 0, 1, 1], [], []>} : vector<8x8xf32>, vector<8x16xf32>, vector<8x16xf32> -> vector<8x16xf32>
    %55 = vector.extract_strided_slice %16 {offsets = [0, 32], sizes = [8, 16], strides = [1, 1]} : vector<8x64xf32> to vector<8x16xf32>
    %56 = vector.extract_strided_slice %20 {offsets = [0, 32], sizes = [8, 16], strides = [1, 1]} : vector<8x64xf32> to vector<8x16xf32>
    %57 = vector.extract_strided_slice %9 {offsets = [0, 32], sizes = [8, 16], strides = [1, 1]} : vector<8x64xf32> to vector<8x16xf32>
    %cst_24 = arith.constant dense<0.000000e+00> : vector<8x8xf32>
    %58 = tpu.matmul %55, %56, %cst_24 {dimension_numbers = #tpu.dot_dimension_numbers<[1], [1], [0], [0], [0, 0, 1, 0], [], []>} : vector<8x16xf32>, vector<8x16xf32>, vector<8x8xf32> -> vector<8x8xf32>
    %cst_25 = arith.constant 2.500000e-01 : f32
    %59 = vector.broadcast %cst_25 : f32 to vector<8x8xf32>
    %60 = arith.mulf %58, %59 : vector<8x8xf32>
    %cst_26 = arith.constant dense<0xFF800000> : vector<8xf32>
    %61 = vector.multi_reduction <maximumf>, %60, %cst_26 [1] : vector<8x8xf32> to vector<8xf32>
    %62 = vector.shape_cast %61 : vector<8xf32> to vector<8x1xf32>
    %63 = vector.broadcast %62 : vector<8x1xf32> to vector<8x8xf32>
    %64 = arith.subf %60, %63 : vector<8x8xf32>
    %65 = math.exp %64 : vector<8x8xf32>
    %cst_27 = arith.constant dense<0.000000e+00> : vector<8xf32>
    %66 = vector.multi_reduction <add>, %65, %cst_27 [1] : vector<8x8xf32> to vector<8xf32>
    %67 = vector.shape_cast %66 : vector<8xf32> to vector<8x1xf32>
    %68 = tpu.reciprocal %67 : vector<8x1xf32> -> vector<8x1xf32>
    %69 = vector.broadcast %68 : vector<8x1xf32> to vector<8x8xf32>
    %70 = arith.mulf %65, %69 : vector<8x8xf32>
    %cst_28 = arith.constant dense<0.000000e+00> : vector<8x16xf32>
    %71 = tpu.matmul %70, %57, %cst_28 {dimension_numbers = #tpu.dot_dimension_numbers<[1], [0], [0], [1], [0, 0, 1, 1], [], []>} : vector<8x8xf32>, vector<8x16xf32>, vector<8x16xf32> -> vector<8x16xf32>
    %72 = vector.extract_strided_slice %16 {offsets = [0, 48], sizes = [8, 16], strides = [1, 1]} : vector<8x64xf32> to vector<8x16xf32>
    %73 = vector.extract_strided_slice %20 {offsets = [0, 48], sizes = [8, 16], strides = [1, 1]} : vector<8x64xf32> to vector<8x16xf32>
    %74 = vector.extract_strided_slice %9 {offsets = [0, 48], sizes = [8, 16], strides = [1, 1]} : vector<8x64xf32> to vector<8x16xf32>
    %cst_29 = arith.constant dense<0.000000e+00> : vector<8x8xf32>
    %75 = tpu.matmul %72, %73, %cst_29 {dimension_numbers = #tpu.dot_dimension_numbers<[1], [1], [0], [0], [0, 0, 1, 0], [], []>} : vector<8x16xf32>, vector<8x16xf32>, vector<8x8xf32> -> vector<8x8xf32>
    %cst_30 = arith.constant 2.500000e-01 : f32
    %76 = vector.broadcast %cst_30 : f32 to vector<8x8xf32>
    %77 = arith.mulf %75, %76 : vector<8x8xf32>
    %cst_31 = arith.constant dense<0xFF800000> : vector<8xf32>
    %78 = vector.multi_reduction <maximumf>, %77, %cst_31 [1] : vector<8x8xf32> to vector<8xf32>
    %79 = vector.shape_cast %78 : vector<8xf32> to vector<8x1xf32>
    %80 = vector.broadcast %79 : vector<8x1xf32> to vector<8x8xf32>
    %81 = arith.subf %77, %80 : vector<8x8xf32>
    %82 = math.exp %81 : vector<8x8xf32>
    %cst_32 = arith.constant dense<0.000000e+00> : vector<8xf32>
    %83 = vector.multi_reduction <add>, %82, %cst_32 [1] : vector<8x8xf32> to vector<8xf32>
    %84 = vector.shape_cast %83 : vector<8xf32> to vector<8x1xf32>
    %85 = tpu.reciprocal %84 : vector<8x1xf32> -> vector<8x1xf32>
    %86 = vector.broadcast %85 : vector<8x1xf32> to vector<8x8xf32>
    %87 = arith.mulf %82, %86 : vector<8x8xf32>
    %cst_33 = arith.constant dense<0.000000e+00> : vector<8x16xf32>
    %88 = tpu.matmul %87, %74, %cst_33 {dimension_numbers = #tpu.dot_dimension_numbers<[1], [0], [0], [1], [0, 0, 1, 1], [], []>} : vector<8x8xf32>, vector<8x16xf32>, vector<8x16xf32> -> vector<8x16xf32>
    %89 = tpu.concatenate %37, %54, %71, %88 in 1 : vector<8x16xf32>, vector<8x16xf32>, vector<8x16xf32>, vector<8x16xf32> -> vector<8x64xf32>
    %c0_34 = arith.constant 0 : index
    %c0_35 = arith.constant 0 : index
    %90 = vector.load %arg4[%c0_34, %c0_35] : memref<64x64xf32, #tpu.memory_space<vmem>>, vector<64x64xf32>
    %cst_36 = arith.constant dense<0.000000e+00> : vector<8x64xf32>
    %91 = tpu.matmul %89, %90, %cst_36 {dimension_numbers = #tpu.dot_dimension_numbers<[1], [0], [0], [1], [0, 0, 1, 1], [], []>} : vector<8x64xf32>, vector<64x64xf32>, vector<8x64xf32> -> vector<8x64xf32>
    %c0_37 = arith.constant 0 : index
    %c0_38 = arith.constant 0 : index
    %92 = vector.load %arg5[%c0_37, %c0_38] : memref<1x64xf32, #tpu.memory_space<vmem>>, vector<1x64xf32>
    %93 = vector.broadcast %92 : vector<1x64xf32> to vector<8x64xf32>
    %94 = arith.addf %91, %93 : vector<8x64xf32>
    %c0_39 = arith.constant 0 : index
    %c0_40 = arith.constant 0 : index
    %c0_41 = arith.constant 0 : index
    %95 = vector.load %arg9[%c0_39, %c0_40, %c0_41] : memref<1x8x64xf32, #tpu.memory_space<vmem>>, vector<1x8x64xf32>
    %96 = vector.shape_cast %95 : vector<1x8x64xf32> to vector<8x64xf32>
    %97 = vector.shape_cast %94 : vector<8x64xf32> to vector<1x8x64xf32>
    tpu.vector_store %arg9[%c0_39, %c0_40, %c0_41], %97 {strides = array<i32>} : memref<1x8x64xf32, #tpu.memory_space<vmem>>, vector<1x8x64xf32>,
    return
  }
  func.func @transform_0(%arg0: i32) -> (i32, i32, i32) {
    %c0_i32 = arith.constant 0 : i32
    %c0_i32_0 = arith.constant 0 : i32
    %c0_i32_1 = arith.constant 0 : i32
    return %arg0, %c0_i32, %c0_i32_0 : i32, i32, i32
  }
  func.func @transform_1(%arg0: i32) -> (i32, i32) {
    %c0_i32 = arith.constant 0 : i32
    %c0_i32_0 = arith.constant 0 : i32
    %c0_i32_1 = arith.constant 0 : i32
    return %c0_i32, %c0_i32_0 : i32, i32
  }
  func.func @transform_2(%arg0: i32) -> (i32, i32) {
    %c0_i32 = arith.constant 0 : i32
    %c0_i32_0 = arith.constant 0 : i32
    %c0_i32_1 = arith.constant 0 : i32
    return %c0_i32, %c0_i32_0 : i32, i32
  }
  func.func @transform_3(%arg0: i32) -> (i32, i32) {
    %c0_i32 = arith.constant 0 : i32
    %c0_i32_0 = arith.constant 0 : i32
    %c0_i32_1 = arith.constant 0 : i32
    return %c0_i32, %c0_i32_0 : i32, i32
  }
  func.func @transform_4(%arg0: i32) -> (i32, i32) {
    %c0_i32 = arith.constant 0 : i32
    %c0_i32_0 = arith.constant 0 : i32
    %c0_i32_1 = arith.constant 0 : i32
    return %c0_i32, %c0_i32_0 : i32, i32
  }
  func.func @transform_5(%arg0: i32) -> (i32, i32) {
    %c0_i32 = arith.constant 0 : i32
    %c0_i32_0 = arith.constant 0 : i32
    %c0_i32_1 = arith.constant 0 : i32
    return %c0_i32, %c0_i32_0 : i32, i32
  }
  func.func @transform_6(%arg0: i32) -> (i32, i32) {
    %c0_i32 = arith.constant 0 : i32
    %c0_i32_0 = arith.constant 0 : i32
    %c0_i32_1 = arith.constant 0 : i32
    return %c0_i32, %c0_i32_0 : i32, i32
  }
  func.func @transform_7(%arg0: i32) -> (i32, i32) {
    %c0_i32 = arith.constant 0 : i32
    %c0_i32_0 = arith.constant 0 : i32
    %c0_i32_1 = arith.constant 0 : i32
    return %c0_i32, %c0_i32_0 : i32, i32
  }
  func.func @transform_8(%arg0: i32) -> (i32, i32, i32) {
    %c0_i32 = arith.constant 0 : i32
    %c0_i32_0 = arith.constant 0 : i32
    %c0_i32_1 = arith.constant 0 : i32
    return %arg0, %c0_i32, %c0_i32_0 : i32, i32, i32
  }
}

</mosaic_0001>

<llo_original>
// kernel: tpu_custom_call.1
$region0: #{tpu_custom_call.1}
  #allocation0 [shape = 'u32[]', space=smem, size = 0x4, offset = 0x4, fixed_abs, tag = 'smem constant byte address 0x4 - core index']
  #allocation1 [shape = 'u32[144,128]{1,0:T(1,128)}', space=vmem, size = 0x12000, scoped, tag = 'internal scratch']
  %s0 = inlined_call_operand.hbm [shape: f32[2,8,64], index: 0, kind: input, shape index: {}]
  %s1 = inlined_call_operand.hbm [shape: f32[64,192], index: 1, kind: input, shape index: {}]
  %s2 = inlined_call_operand.vmem [shape: f32[1,192], index: 2, kind: input, shape index: {}]
  %s3 = inlined_call_operand.hbm [shape: f32[64,64], index: 3, kind: input, shape index: {}]
  %s4 = inlined_call_operand.hbm [shape: f32[1,64], index: 4, kind: input, shape index: {}]
  %s5 = inlined_call_operand.vmem [shape: f32[8,64], index: 5, kind: input, shape index: {}]
  %s6 = inlined_call_operand.vmem [shape: f32[8,64], index: 6, kind: input, shape index: {}]
  %s7 = inlined_call_operand.hbm [shape: f32[64,64], index: 7, kind: input, shape index: {}]
  %s8 = inlined_call_operand.hbm [shape: f32[2,8,64], index: 8, kind: output, shape index: {}]
  %s9 = sld [smem:[#allocation0]]
  $region85: #{tpu_custom_call.1} parent=0
    _
  %s11 = ssub.s32 1, %s9
  %s12 = scalar_select 0, %s11, %s9
  $region1: #{tpu_custom_call.1} parent=0
    #allocation2 [shape = 'u8[8192]{0}', space=vmem, size = 0x2000, scoped, tag = 'input window, operand 0']
    #allocation3 [shape = 's32[2]{0}', space=sflag, size = 0x8, scoped, tag = 'scoped memory for tpu_custom_call.1']
    #allocation4 [shape = 's32[2]{0}', space=sflag, size = 0x8, scoped, tag = 'scoped memory for tpu_custom_call.1']
    #allocation5 [shape = 'u8[65536]{0}', space=vmem, size = 0x10000, scoped, tag = 'input window, operand 1, single buffered']
    #allocation6 [shape = 's32[1]{0}', space=sflag, size = 0x4, scoped, tag = 'scoped memory for tpu_custom_call.1']
    #allocation7 [shape = 'u8[32768]{0}', space=vmem, size = 0x8000, scoped, tag = 'input window, operand 3, single buffered']
    #allocation8 [shape = 'u8[512]{0}', space=vmem, size = 0x400, scoped, tag = 'input window, operand 4, single buffered']
    #allocation9 [shape = 's32[1]{0}', space=sflag, size = 0x4, scoped, tag = 'scoped memory for tpu_custom_call.1']
    #allocation10 [shape = 'u8[32768]{0}', space=vmem, size = 0x8000, scoped, tag = 'input window, operand 7, single buffered']
    #allocation11 [shape = 'u8[8192]{0}', space=vmem, size = 0x2000, scoped, tag = 'output window, operand 0']
    %13 = vsyncpa [#allocation3], 0
    %s14 = scalar_lea.sflag [#allocation3], 1
    %15 = vsyncpa %s14, 0
    %16 = vsyncpa [#allocation6], 0
    %17 = vsyncpa [#allocation9], 0
    %18 = vsyncpa [#allocation4], 0
    %s19 = scalar_lea.sflag [#allocation4], 1
    %20 = vsyncpa %s19, 0
    loop: start=0, step=1, limit=4
    $region2: #{tpu_custom_call.1} parent=1 // loop_pre_header
      _
    $region3: #{tpu_custom_call.1} parent=1 // loop_header
      %s22 = sphi 0, %s26
      %p23 = scmp.ge.s32.totalorder %s22, 4
      %s32 = sphi 0, %s34
      %s35 = sphi 0, %s32
      %s36 = sphi 0, %s35
      %s52 = sphi 0, %s36
      %s56 = sphi 0, %s56
      %s58 = sphi 0, %s56
      %s59 = sphi 0, %s58
      %s73 = sphi 0, %s59
      %s77 = sphi 0, %s77
      %s79 = sphi 0, %s77
      %s80 = sphi 0, %s79
      %s94 = sphi 0, %s80
      %s98 = sphi 0, %s98
      %s100 = sphi 0, %s98
      %s101 = sphi 0, %s100
      %s115 = sphi 0, %s101
      %s119 = sphi 0, %s119
      %s121 = sphi 0, %s119
      %s122 = sphi 0, %s121
      %s136 = sphi 0, %s122
      %s140 = sphi 0, %s140
      %s142 = sphi 0, %s140
      %s143 = sphi 0, %s142
      %s157 = sphi 0, %s143
      %s161 = sphi 0, %s161
      %s163 = sphi 0, %s161
      %s164 = sphi 0, %s163
      %s178 = sphi 0, %s164
      %s182 = sphi 0, %s182
      %s184 = sphi 0, %s182
      %s185 = sphi 0, %s184
      %s199 = sphi 0, %s185
      %s205 = sphi 0, %s207
      %s208 = sphi 0, %s205
      %s209 = sphi 0, %s208
      %s225 = sphi 0, %s209
    $region4: #{tpu_custom_call.1} parent=1 // loop_header_branch
      %25 = sbr.rel (%p23) target = $region8
    $region5: #{tpu_custom_call.1} parent=1 // loop_body
      %s27 = ssub.s32 %s22, 1
      %s28 = ssub.s32 %s22, 2
      %s29 = sadd.s32 %s22, 1
      %s30 = ssub.s32 %s22, %s29
      %p31 = scmp.eq.s32.totalorder %s30, 0
      %s33 = sadd.s32 %s32, 1
      %s34 = scalar_select %p31, %s32, %s33
      %p37 = pneg %p31
      %p38 = scmp.eq.s32.totalorder %s22, 1
      %p39 = por %p37, %p38
      %p40 = scmp.ne.s32.totalorder %s32, %s35
      %p41 = scmp.eq.s32.totalorder %s22, 0
      %p42 = por %p40, %p41
      %p43 = scmp.ne.s32.totalorder %s32, %s35
      %p44 = scmp.eq.s32.totalorder %s27, 1
      %p45 = por %p43, %p44
      %p46 = scmp.ne.s32.totalorder %s35, %s36
      %p47 = scmp.eq.s32.totalorder %s27, 0
      %p48 = por %p46, %p47
      %p49 = scmp.ne.s32.totalorder %s35, %s36
      %p50 = scmp.eq.s32.totalorder %s28, 1
      %p51 = por %p49, %p50
      %p53 = scmp.ne.s32.totalorder %s36, %s52
      %p54 = scmp.eq.s32.totalorder %s28, 0
      %p55 = por %p53, %p54
      %s57 = sadd.s32 %s56, 1
      %p60 = scmp.eq.s32.totalorder %s22, 1
      %p61 = scmp.ne.s32.totalorder %s56, %s58
      %p62 = scmp.eq.s32.totalorder %s22, 0
      %p63 = por %p61, %p62
      %p64 = scmp.ne.s32.totalorder %s56, %s58
      %p65 = scmp.eq.s32.totalorder %s27, 1
      %p66 = por %p64, %p65
      %p67 = scmp.ne.s32.totalorder %s58, %s59
      %p68 = scmp.eq.s32.totalorder %s27, 0
      %p69 = por %p67, %p68
      %p70 = scmp.ne.s32.totalorder %s58, %s59
      %p71 = scmp.eq.s32.totalorder %s28, 1
      %p72 = por %p70, %p71
      %p74 = scmp.ne.s32.totalorder %s59, %s73
      %p75 = scmp.eq.s32.totalorder %s28, 0
      %p76 = por %p74, %p75
      %s78 = sadd.s32 %s77, 1
      %p81 = scmp.eq.s32.totalorder %s22, 1
      %p82 = scmp.ne.s32.totalorder %s77, %s79
      %p83 = scmp.eq.s32.totalorder %s22, 0
      %p84 = por %p82, %p83
      %p85 = scmp.ne.s32.totalorder %s77, %s79
      %p86 = scmp.eq.s32.totalorder %s27, 1
      %p87 = por %p85, %p86
      %p88 = scmp.ne.s32.totalorder %s79, %s80
      %p89 = scmp.eq.s32.totalorder %s27, 0
      %p90 = por %p88, %p89
      %p91 = scmp.ne.s32.totalorder %s79, %s80
      %p92 = scmp.eq.s32.totalorder %s28, 1
      %p93 = por %p91, %p92
      %p95 = scmp.ne.s32.totalorder %s80, %s94
      %p96 = scmp.eq.s32.totalorder %s28, 0
      %p97 = por %p95, %p96
      %s99 = sadd.s32 %s98, 1
      %p102 = scmp.eq.s32.totalorder %s22, 1
      %p103 = scmp.ne.s32.totalorder %s98, %s100
      %p104 = scmp.eq.s32.totalorder %s22, 0
      %p105 = por %p103, %p104
      %p106 = scmp.ne.s32.totalorder %s98, %s100
      %p107 = scmp.eq.s32.totalorder %s27, 1
      %p108 = por %p106, %p107
      %p109 = scmp.ne.s32.totalorder %s100, %s101
      %p110 = scmp.eq.s32.totalorder %s27, 0
      %p111 = por %p109, %p110
      %p112 = scmp.ne.s32.totalorder %s100, %s101
      %p113 = scmp.eq.s32.totalorder %s28, 1
      %p114 = por %p112, %p113
      %p116 = scmp.ne.s32.totalorder %s101, %s115
      %p117 = scmp.eq.s32.totalorder %s28, 0
      %p118 = por %p116, %p117
      %s120 = sadd.s32 %s119, 1
      %p123 = scmp.eq.s32.totalorder %s22, 1
      %p124 = scmp.ne.s32.totalorder %s119, %s121
      %p125 = scmp.eq.s32.totalorder %s22, 0
      %p126 = por %p124, %p125
      %p127 = scmp.ne.s32.totalorder %s119, %s121
      %p128 = scmp.eq.s32.totalorder %s27, 1
      %p129 = por %p127, %p128
      %p130 = scmp.ne.s32.totalorder %s121, %s122
      %p131 = scmp.eq.s32.totalorder %s27, 0
      %p132 = por %p130, %p131
      %p133 = scmp.ne.s32.totalorder %s121, %s122
      %p134 = scmp.eq.s32.totalorder %s28, 1
      %p135 = por %p133, %p134
      %p137 = scmp.ne.s32.totalorder %s122, %s136
      %p138 = scmp.eq.s32.totalorder %s28, 0
      %p139 = por %p137, %p138
      %s141 = sadd.s32 %s140, 1
      %p144 = scmp.eq.s32.totalorder %s22, 1
      %p145 = scmp.ne.s32.totalorder %s140, %s142
      %p146 = scmp.eq.s32.totalorder %s22, 0
      %p147 = por %p145, %p146
      %p148 = scmp.ne.s32.totalorder %s140, %s142
      %p149 = scmp.eq.s32.totalorder %s27, 1
      %p150 = por %p148, %p149
      %p151 = scmp.ne.s32.totalorder %s142, %s143
      %p152 = scmp.eq.s32.totalorder %s27, 0
      %p153 = por %p151, %p152
      %p154 = scmp.ne.s32.totalorder %s142, %s143
      %p155 = scmp.eq.s32.totalorder %s28, 1
      %p156 = por %p154, %p155
      %p158 = scmp.ne.s32.totalorder %s143, %s157
      %p159 = scmp.eq.s32.totalorder %s28, 0
      %p160 = por %p158, %p159
      %s162 = sadd.s32 %s161, 1
      %p165 = scmp.eq.s32.totalorder %s22, 1
      %p166 = scmp.ne.s32.totalorder %s161, %s163
      %p167 = scmp.eq.s32.totalorder %s22, 0
      %p168 = por %p166, %p167
      %p169 = scmp.ne.s32.totalorder %s161, %s163
      %p170 = scmp.eq.s32.totalorder %s27, 1
      %p171 = por %p169, %p170
      %p172 = scmp.ne.s32.totalorder %s163, %s164
      %p173 = scmp.eq.s32.totalorder %s27, 0
      %p174 = por %p172, %p173
      %p175 = scmp.ne.s32.totalorder %s163, %s164
      %p176 = scmp.eq.s32.totalorder %s28, 1
      %p177 = por %p175, %p176
      %p179 = scmp.ne.s32.totalorder %s164, %s178
      %p180 = scmp.eq.s32.totalorder %s28, 0
      %p181 = por %p179, %p180
      %s183 = sadd.s32 %s182, 1
      %p186 = scmp.eq.s32.totalorder %s22, 1
      %p187 = scmp.ne.s32.totalorder %s182, %s184
      %p188 = scmp.eq.s32.totalorder %s22, 0
      %p189 = por %p187, %p188
      %p190 = scmp.ne.s32.totalorder %s182, %s184
      %p191 = scmp.eq.s32.totalorder %s27, 1
      %p192 = por %p190, %p191
      %p193 = scmp.ne.s32.totalorder %s184, %s185
      %p194 = scmp.eq.s32.totalorder %s27, 0
      %p195 = por %p193, %p194
      %p196 = scmp.ne.s32.totalorder %s184, %s185
      %p197 = scmp.eq.s32.totalorder %s28, 1
      %p198 = por %p196, %p197
      %p200 = scmp.ne.s32.totalorder %s185, %s199
      %p201 = scmp.eq.s32.totalorder %s28, 0
      %p202 = por %p200, %p201
      %s203 = ssub.s32 %s22, %s29
      %p204 = scmp.eq.s32.totalorder %s203, 0
      %s206 = sadd.s32 %s205, 1
      %s207 = scalar_select %p204, %s205, %s206
      %p210 = pneg %p204
      %p211 = scmp.eq.s32.totalorder %s22, 1
      %p212 = por %p210, %p211
      %p213 = scmp.ne.s32.totalorder %s205, %s208
      %p214 = scmp.eq.s32.totalorder %s22, 0
      %p215 = por %p213, %p214
      %p216 = scmp.ne.s32.totalorder %s205, %s208
      %p217 = scmp.eq.s32.totalorder %s27, 1
      %p218 = por %p216, %p217
      %p219 = scmp.ne.s32.totalorder %s208, %s209
      %p220 = scmp.eq.s32.totalorder %s27, 0
      %p221 = por %p219, %p220
      %p222 = scmp.ne.s32.totalorder %s208, %s209
      %p223 = scmp.eq.s32.totalorder %s28, 1
      %p224 = por %p222, %p223
      %p226 = scmp.ne.s32.totalorder %s209, %s225
      %p227 = scmp.eq.s32.totalorder %s28, 0
      %p228 = por %p226, %p227
      %p229 = scmp.le.s32.totalorder 1, %s22
      %p230 = scmp.lt.s32.totalorder %s22, 3
      %p231 = pnand %p229, %p230
      %p232 = pneg %p231
      // Predicated region
      $region9: #{tpu_custom_call.1} parent=5 // pred_check
        _
      $region10: #{tpu_custom_call.1} parent=5 // pred_check_branch
        %234 = sbr.rel (%p231) target = $region12
      $region11: #{tpu_custom_call.1} parent=5 // pred_region
        %s235 = ssub.s32 %s22, 1
        // Predicated region
        $region13: #{tpu_custom_call.1} parent=11 // pred_check
          %p236 = pneg %p69
        $region14: #{tpu_custom_call.1} parent=11 // pred_check_branch
          %238 = sbr.rel (%p236) target = $region16
        $region15: #{tpu_custom_call.1} parent=11 // pred_region
          %s240 = ssub.s32 2048, 2048
          %241 = vsyncadd [#allocation6], %s240
          %s242 = sshll.u32 [#allocation5], 4
          %s243 = int_to_ptr.vmem [resolvable:$true] %s242
          %248 = dma.hbm_to_vmem [thread:$0]  %s1, 2048, %s243, [#allocation6], 256, 256, 16
        $region16: #{tpu_custom_call.1} parent=11 // pred_fallthru
          _
        // Predicated region
        $region17: #{tpu_custom_call.1} parent=11 // pred_check
          %p249 = pneg %p90
        $region18: #{tpu_custom_call.1} parent=11 // pred_check_branch
          %251 = sbr.rel (%p249) target = $region20
        $region19: #{tpu_custom_call.1} parent=11 // pred_region
          _
        $region20: #{tpu_custom_call.1} parent=11 // pred_fallthru
          _
        // Predicated region
        $region21: #{tpu_custom_call.1} parent=11 // pred_check
          %p252 = pneg %p111
        $region22: #{tpu_custom_call.1} parent=11 // pred_check_branch
          %254 = sbr.rel (%p252) target = $region24
        $region23: #{tpu_custom_call.1} parent=11 // pred_region
          %s256 = ssub.s32 1024, 1024
          %257 = vsyncadd [#allocation6], %s256
          %s258 = sshll.u32 [#allocation7], 4
          %s259 = int_to_ptr.vmem [resolvable:$true] %s258
          %264 = dma.hbm_to_vmem [thread:$0]  %s3, 1024, %s259, [#allocation6], 128, 128, 8
        $region24: #{tpu_custom_call.1} parent=11 // pred_fallthru
          _
        // Predicated region
        $region25: #{tpu_custom_call.1} parent=11 // pred_check
          %p265 = pneg %p132
        $region26: #{tpu_custom_call.1} parent=11 // pred_check_branch
          %267 = sbr.rel (%p265) target = $region28
        $region27: #{tpu_custom_call.1} parent=11 // pred_region
          %s269 = ssub.s32 16, 16
          %270 = vsyncadd [#allocation9], %s269
          %s272 = sshll.u32 [#allocation8], 4
          %s273 = int_to_ptr.vmem [resolvable:$true] %s272
          %275 = dma.hbm_to_vmem [thread:$0]  %s4, 16, %s273, [#allocation9]
        $region28: #{tpu_custom_call.1} parent=11 // pred_fallthru
          _
        // Predicated region
        $region29: #{tpu_custom_call.1} parent=11 // pred_check
          %p276 = pneg %p153
        $region30: #{tpu_custom_call.1} parent=11 // pred_check_branch
          %278 = sbr.rel (%p276) target = $region32
        $region31: #{tpu_custom_call.1} parent=11 // pred_region
          _
        $region32: #{tpu_custom_call.1} parent=11 // pred_fallthru
          _
        // Predicated region
        $region33: #{tpu_custom_call.1} parent=11 // pred_check
          %p279 = pneg %p174
        $region34: #{tpu_custom_call.1} parent=11 // pred_check_branch
          %281 = sbr.rel (%p279) target = $region36
        $region35: #{tpu_custom_call.1} parent=11 // pred_region
          _
        $region36: #{tpu_custom_call.1} parent=11 // pred_fallthru
          _
        // Predicated region
        $region37: #{tpu_custom_call.1} parent=11 // pred_check
          %p282 = pneg %p195
        $region38: #{tpu_custom_call.1} parent=11 // pred_check_branch
          %284 = sbr.rel (%p282) target = $region40
        $region39: #{tpu_custom_call.1} parent=11 // pred_region
          %s286 = ssub.s32 1024, 1024
          %287 = vsyncadd [#allocation9], %s286
          %s288 = sshll.u32 [#allocation10], 4
          %s289 = int_to_ptr.vmem [resolvable:$true] %s288
          %294 = dma.hbm_to_vmem [thread:$0]  %s7, 1024, %s289, [#allocation9], 128, 128, 8
        $region40: #{tpu_custom_call.1} parent=11 // pred_fallthru
          _
      $region12: #{tpu_custom_call.1} parent=5 // pred_fallthru
        _
      %p295 = scmp.lt.s32.totalorder %s22, 2
      // Predicated region
      $region41: #{tpu_custom_call.1} parent=5 // pred_check
        %p296 = pneg %p295
      $region42: #{tpu_custom_call.1} parent=5 // pred_check_branch
        %298 = sbr.rel (%p296) target = $region44
      $region43: #{tpu_custom_call.1} parent=5 // pred_region
        // Predicated region
        $region45: #{tpu_custom_call.1} parent=43 // pred_check
          %p299 = pneg %p42
        $region46: #{tpu_custom_call.1} parent=43 // pred_check_branch
          %301 = sbr.rel (%p299) target = $region48
        $region47: #{tpu_custom_call.1} parent=43 // pred_region
          %s302 = sand.u32 %s32, 1
          %s303 = scalar_lea.sflag [#allocation3], %s302
          %s304 = sand.u32 %s32, 1
          %s305 = smul.addr %s304, 8
          %s306 = scalar_lea.vmem [#allocation2], %s305
          %s308 = ssub.s32 128, 128
          %309 = vsyncadd %s303, %s308
          %s310 = smul.addr %s22, 128
          %s311 = scalar_lea.hbm %s0, %s310
          %s313 = sshll.u32 %s306, 4
          %s314 = int_to_ptr.vmem [resolvable:$true] %s313
          %316 = dma.hbm_to_vmem [thread:$0]  %s311, 128, %s314, %s303
        $region48: #{tpu_custom_call.1} parent=43 // pred_fallthru
          _
      $region44: #{tpu_custom_call.1} parent=5 // pred_fallthru
        _
      %p317 = scmp.le.s32.totalorder 1, %s22
      %p318 = scmp.lt.s32.totalorder %s22, 3
      %p319 = pnand %p317, %p318
      %p320 = pneg %p319
      // Predicated region
      $region49: #{tpu_custom_call.1} parent=5 // pred_check
        _
      $region50: #{tpu_custom_call.1} parent=5 // pred_check_branch
        %322 = sbr.rel (%p319) target = $region52
      $region51: #{tpu_custom_call.1} parent=5 // pred_region
        %s323 = ssub.s32 %s22, 1
        %s324 = sand.u32 %s35, 1
        %s325 = scalar_lea.sflag [#allocation3], %s324
        %s326 = sand.u32 %s35, 1
        %s327 = smul.addr %s326, 8
        %s328 = scalar_lea.vmem [#allocation2], %s327
        // Predicated region
        $region53: #{tpu_custom_call.1} parent=51 // pred_check
          %p329 = pneg %p48
        $region54: #{tpu_custom_call.1} parent=51 // pred_check_branch
          %331 = sbr.rel (%p329) target = $region56
        $region55: #{tpu_custom_call.1} parent=51 // pred_region
          %332 = dma.done %s325, 128
        $region56: #{tpu_custom_call.1} parent=51 // pred_fallthru
          _
        // Predicated region
        $region57: #{tpu_custom_call.1} parent=51 // pred_check
          %p333 = pneg %p69
        $region58: #{tpu_custom_call.1} parent=51 // pred_check_branch
          %335 = sbr.rel (%p333) target = $region60
        $region59: #{tpu_custom_call.1} parent=51 // pred_region
          %336 = dma.done [#allocation6], 2048
        $region60: #{tpu_custom_call.1} parent=51 // pred_fallthru
          _
        // Predicated region
        $region61: #{tpu_custom_call.1} parent=51 // pred_check
          %p337 = pneg %p111
        $region62: #{tpu_custom_call.1} parent=51 // pred_check_branch
          %339 = sbr.rel (%p337) target = $region64
        $region63: #{tpu_custom_call.1} parent=51 // pred_region
          %340 = dma.done [#allocation6], 1024
        $region64: #{tpu_custom_call.1} parent=51 // pred_fallthru
          _
        // Predicated region
        $region65: #{tpu_custom_call.1} parent=51 // pred_check
          %p341 = pneg %p132
        $region66: #{tpu_custom_call.1} parent=51 // pred_check_branch
          %343 = sbr.rel (%p341) target = $region68
        $region67: #{tpu_custom_call.1} parent=51 // pred_region
          %344 = dma.done [#allocation9], 16
        $region68: #{tpu_custom_call.1} parent=51 // pred_fallthru
          _
        // Predicated region
        $region69: #{tpu_custom_call.1} parent=51 // pred_check
          %p345 = pneg %p195
        $region70: #{tpu_custom_call.1} parent=51 // pred_check_branch
          %347 = sbr.rel (%p345) target = $region72
        $region71: #{tpu_custom_call.1} parent=51 // pred_region
          %348 = dma.done [#allocation9], 1024
        $region72: #{tpu_custom_call.1} parent=51 // pred_fallthru
          _
        %s349 = sand.u32 %s35, 1
        %s350 = scalar_lea.sflag [#allocation3], %s349
        %s351 = sand.u32 %s35, 1
        %s352 = smul.addr %s351, 8
        %s353 = scalar_lea.vmem [#allocation2], %s352
        %p354 = pneg %p48
        %p355 = pneg %p45
        %p356 = pneg %p69
        %p357 = pneg %p66
        %p358 = pneg %p90
        %p359 = pneg %p87
        %p360 = pneg %p111
        %p361 = pneg %p108
        %p362 = pneg %p132
        %p363 = pneg %p129
        %p364 = pneg %p153
        %p365 = pneg %p150
        %p366 = pneg %p174
        %p367 = pneg %p171
        %p368 = pneg %p195
        %p369 = pneg %p192
        %p370 = pneg %p221
        %p371 = pneg %p218
        %s372 = sand.u32 %s208, 1
        %s373 = scalar_lea.sflag [#allocation4], %s372
        %s374 = sand.u32 %s208, 1
        %s375 = smul.addr %s374, 8
        %s376 = scalar_lea.vmem [#allocation11], %s375
        %v377 = vld [vmem:[%s328] sm:$0xff]
        %v378 = vld [vmem:[#allocation5] sm:$0xff]
        %v379 = vld [vmem:[#allocation5 + $0x8] sm:$0xff]
        %v380 = vld [vmem:[#allocation5 + $0x10] sm:$0xff]
        %v381 = vld [vmem:[#allocation5 + $0x18] sm:$0xff]
        %v382 = vld [vmem:[#allocation5 + $0x20] sm:$0xff]
        %v383 = vld [vmem:[#allocation5 + $0x28] sm:$0xff]
        %v384 = vld [vmem:[#allocation5 + $0x30] sm:$0xff]
        %v385 = vld [vmem:[#allocation5 + $0x38] sm:$0xff]
        %v386 = vld [vmem:[#allocation5 + $0x40] sm:$0xff]
        %v387 = vld [vmem:[#allocation5 + $0x48] sm:$0xff]
        %v388 = vld [vmem:[#allocation5 + $0x50] sm:$0xff]
        %v389 = vld [vmem:[#allocation5 + $0x58] sm:$0xff]
        %v390 = vld [vmem:[#allocation5 + $0x60] sm:$0xff]
        %v391 = vld [vmem:[#allocation5 + $0x68] sm:$0xff]
        %v392 = vld [vmem:[#allocation5 + $0x70] sm:$0xff]
        %v393 = vld [vmem:[#allocation5 + $0x78] sm:$0xff]
        %v394 = vld [vmem:[%s2] sm:$0x3]
        %v396 = vlaneseq
        %v397 = vshrl.u32 %v396, 7
        %v398 = vsub.s32 0, %v397
        %v399 = vrot.slane %v394, %v398
        %v400 = vlaneseq
        %v401 = vshrl.u32 %v400, 7
        %v402 = vsub.s32 1, %v401
        %v403 = vrot.slane %v394, %v402
        %vm406 = vcmask 523264
        %v408 = vsel %vm406, %v377, 0
        %410 = vmatprep.subr.mxu0 %v379
        %411 = vmatpush1.msra.mxu0 %v378
        %412 = vmatprep.subr.mxu0 %v381
        %413 = vmatpush1.msra.mxu0 %v380
        %414 = vmatprep.subr.mxu0 %v383
        %415 = vmatpush1.msra.mxu0 %v382
        %416 = vmatprep.subr.mxu0 %v385
        %417 = vmatpush1.msra.mxu0 %v384
        %418 = vmatprep.subr.mxu0 %v387
        %419 = vmatpush1.msra.mxu0 %v386
        %420 = vmatprep.subr.mxu0 %v389
        %421 = vmatpush1.msra.mxu0 %v388
        %422 = vmatprep.subr.mxu0 %v391
        %423 = vmatpush1.msra.mxu0 %v390
        %424 = vmatprep.subr.mxu0 %v393
        %425 = vmatpush1.msra.mxu0 %v392
        %426 = vmatprep.subr.mxu0 0.0
        %427 = vmatpush1.msra.mxu0 0.0
        %428 = vmatprep.subr.mxu0 0.0
        %429 = vmatpush1.msra.mxu0 0.0
        %430 = vmatprep.subr.mxu0 0.0
        %431 = vmatpush1.msra.mxu0 0.0
        %432 = vmatprep.subr.mxu0 0.0
        %433 = vmatpush1.msra.mxu0 0.0
        %434 = vmatprep.subr.mxu0 0.0
        %435 = vmatpush1.msra.mxu0 0.0
        %436 = vmatprep.subr.mxu0 0.0
        %437 = vmatpush1.msra.mxu0 0.0
        %438 = vmatprep.subr.mxu0 0.0
        %439 = vmatpush1.msra.mxu0 0.0
        %440 = vmatprep.subr.mxu0 0.0
        %441 = vmatpush1.msra.mxu0 0.0
        %442 = vmatprep.subr.mxu0 0.0
        %443 = vmatpush1.msra.mxu0 0.0
        %444 = vmatprep.subr.mxu0 0.0
        %445 = vmatpush1.msra.mxu0 0.0
        %446 = vmatprep.subr.mxu0 0.0
        %447 = vmatpush1.msra.mxu0 0.0
        %448 = vmatprep.subr.mxu0 0.0
        %449 = vmatpush1.msra.mxu0 0.0
        %450 = vmatprep.subr.mxu0 0.0
        %451 = vmatpush1.msra.mxu0 0.0
        %452 = vmatprep.subr.mxu0 0.0
        %453 = vmatpush1.msra.mxu0 0.0
        %454 = vmatprep.subr.mxu0 0.0
        %455 = vmatpush1.msra.mxu0 0.0
        %456 = vmatprep.subr.mxu0 0.0
        %457 = vmatpush1.msra.mxu0 0.0
        %458 = vmatprep.subr.mxu0 0.0
        %459 = vmatpush1.msra.mxu0 0.0
        %460 = vmatprep.subr.mxu0 0.0
        %461 = vmatpush1.msra.mxu0 0.0
        %462 = vmatprep.subr.mxu0 0.0
        %463 = vmatpush1.msra.mxu0 0.0
        %464 = vmatprep.subr.mxu0 0.0
        %465 = vmatpush1.msra.mxu0 0.0
        %466 = vmatprep.subr.mxu0 0.0
        %467 = vmatpush1.msra.mxu0 0.0
        %468 = vmatprep.subr.mxu0 0.0
        %469 = vmatpush1.msra.mxu0 0.0
        %470 = vmatprep.subr.mxu0 0.0
        %471 = vmatpush1.msra.mxu0 0.0
        %472 = vmatprep.subr.mxu0 0.0
        %473 = vmatpush1.msra.mxu0 0.0
        %474 = vmatprep.mubr.f32.mxu0 0.0
        %475 = vmatmul.mubr.f32.gmra.mrb[0].mxu0 %v408
        %v476 = vpop.f32.mrb[0].mxu0
        %v477 = vadd.f32 %v399, %v476
        %v478 = vpop.f32.mrb[0].mxu0
        %v479 = vadd.f32 %v403, %v478
        %480 = vdwg.mxu0
        %v481 = vld [vmem:[%s5] sm:$0xff]
        %v482 = vld [vmem:[%s6] sm:$0xff]
        %v483 = vld [vmem:[#allocation10] sm:$0xff]
        %v484 = vld [vmem:[#allocation10 + $0x8] sm:$0xff]
        %v485 = vld [vmem:[#allocation10 + $0x10] sm:$0xff]
        %v486 = vld [vmem:[#allocation10 + $0x18] sm:$0xff]
        %v487 = vld [vmem:[#allocation10 + $0x20] sm:$0xff]
        %v488 = vld [vmem:[#allocation10 + $0x28] sm:$0xff]
        %v489 = vld [vmem:[#allocation10 + $0x30] sm:$0xff]
        %v490 = vld [vmem:[#allocation10 + $0x38] sm:$0xff]
        %v492 = vsel %vm406, %v477, 0
        %494 = vmatprep.subr.mxu0 0.0
        %495 = vmatpush1.msra.mxu0 %v483
        %496 = vmatprep.subr.mxu0 0.0
        %497 = vmatpush1.msra.mxu0 %v484
        %498 = vmatprep.subr.mxu0 0.0
        %499 = vmatpush1.msra.mxu0 %v485
        %500 = vmatprep.subr.mxu0 0.0
        %501 = vmatpush1.msra.mxu0 %v486
        %502 = vmatprep.subr.mxu0 0.0
        %503 = vmatpush1.msra.mxu0 %v487
        %504 = vmatprep.subr.mxu0 0.0
        %505 = vmatpush1.msra.mxu0 %v488
        %506 = vmatprep.subr.mxu0 0.0
        %507 = vmatpush1.msra.mxu0 %v489
        %508 = vmatprep.subr.mxu0 0.0
        %509 = vmatpush1.msra.mxu0 %v490
        %510 = vmatprep.subr.mxu0 0.0
        %511 = vmatpush1.msra.mxu0 0.0
        %512 = vmatprep.subr.mxu0 0.0
        %513 = vmatpush1.msra.mxu0 0.0
        %514 = vmatprep.subr.mxu0 0.0
        %515 = vmatpush1.msra.mxu0 0.0
        %516 = vmatprep.subr.mxu0 0.0
        %517 = vmatpush1.msra.mxu0 0.0
        %518 = vmatprep.subr.mxu0 0.0
        %519 = vmatpush1.msra.mxu0 0.0
        %520 = vmatprep.subr.mxu0 0.0
        %521 = vmatpush1.msra.mxu0 0.0
        %522 = vmatprep.subr.mxu0 0.0
        %523 = vmatpush1.msra.mxu0 0.0
        %524 = vmatprep.subr.mxu0 0.0
        %525 = vmatpush1.msra.mxu0 0.0
        %526 = vmatprep.subr.mxu0 0.0
        %527 = vmatpush1.msra.mxu0 0.0
        %528 = vmatprep.subr.mxu0 0.0
        %529 = vmatpush1.msra.mxu0 0.0
        %530 = vmatprep.subr.mxu0 0.0
        %531 = vmatpush1.msra.mxu0 0.0
        %532 = vmatprep.subr.mxu0 0.0
        %533 = vmatpush1.msra.mxu0 0.0
        %534 = vmatprep.subr.mxu0 0.0
        %535 = vmatpush1.msra.mxu0 0.0
        %536 = vmatprep.subr.mxu0 0.0
        %537 = vmatpush1.msra.mxu0 0.0
        %538 = vmatprep.subr.mxu0 0.0
        %539 = vmatpush1.msra.mxu0 0.0
        %540 = vmatprep.subr.mxu0 0.0
        %541 = vmatpush1.msra.mxu0 0.0
        %542 = vmatprep.subr.mxu0 0.0
        %543 = vmatpush1.msra.mxu0 0.0
        %544 = vmatprep.subr.mxu0 0.0
        %545 = vmatpush1.msra.mxu0 0.0
        %546 = vmatprep.subr.mxu0 0.0
        %547 = vmatpush1.msra.mxu0 0.0
        %548 = vmatprep.subr.mxu0 0.0
        %549 = vmatpush1.msra.mxu0 0.0
        %550 = vmatprep.subr.mxu0 0.0
        %551 = vmatpush1.msra.mxu0 0.0
        %552 = vmatprep.subr.mxu0 0.0
        %553 = vmatpush1.msra.mxu0 0.0
        %554 = vmatprep.subr.mxu0 0.0
        %555 = vmatpush1.msra.mxu0 0.0
        %556 = vmatprep.subr.mxu0 0.0
        %557 = vmatpush1.msra.mxu0 0.0
        %558 = vmatprep.mubr.f32.mxu0 0.0
        %559 = vmatmul.mubr.f32.gmra.mrb[0].mxu0 %v492
        %v560 = vpop.f32.mrb[0].mxu0
        %v561 = vadd.f32 0.0, %v560
        %v562 = vpop.f32.mrb[0].mxu0
        %563 = vdwg.mxu0
        %v564 = vmul.f32 %v477, %v481
        %v565 = vmul.f32 %v561, %v482
        %v566 = vadd.f32 %v564, %v565
        %567 = vrot.lane.b32.xlu0 %v477, 64
        %v568 = vpop.permute.xlu0 %567
        %v569 = vsel %vm406, %v568, 0
        %571 = vmatprep.subr.mxu0 0.0
        %572 = vmatpush1.msra.mxu0 %v483
        %573 = vmatprep.subr.mxu0 0.0
        %574 = vmatpush1.msra.mxu0 %v484
        %575 = vmatprep.subr.mxu0 0.0
        %576 = vmatpush1.msra.mxu0 %v485
        %577 = vmatprep.subr.mxu0 0.0
        %578 = vmatpush1.msra.mxu0 %v486
        %579 = vmatprep.subr.mxu0 0.0
        %580 = vmatpush1.msra.mxu0 %v487
        %581 = vmatprep.subr.mxu0 0.0
        %582 = vmatpush1.msra.mxu0 %v488
        %583 = vmatprep.subr.mxu0 0.0
        %584 = vmatpush1.msra.mxu0 %v489
        %585 = vmatprep.subr.mxu0 0.0
        %586 = vmatpush1.msra.mxu0 %v490
        %587 = vmatprep.subr.mxu0 0.0
        %588 = vmatpush1.msra.mxu0 0.0
        %589 = vmatprep.subr.mxu0 0.0
        %590 = vmatpush1.msra.mxu0 0.0
        %591 = vmatprep.subr.mxu0 0.0
        %592 = vmatpush1.msra.mxu0 0.0
        %593 = vmatprep.subr.mxu0 0.0
        %594 = vmatpush1.msra.mxu0 0.0
        %595 = vmatprep.subr.mxu0 0.0
        %596 = vmatpush1.msra.mxu0 0.0
        %597 = vmatprep.subr.mxu0 0.0
        %598 = vmatpush1.msra.mxu0 0.0
        %599 = vmatprep.subr.mxu0 0.0
        %600 = vmatpush1.msra.mxu0 0.0
        %601 = vmatprep.subr.mxu0 0.0
        %602 = vmatpush1.msra.mxu0 0.0
        %603 = vmatprep.subr.mxu0 0.0
        %604 = vmatpush1.msra.mxu0 0.0
        %605 = vmatprep.subr.mxu0 0.0
        %606 = vmatpush1.msra.mxu0 0.0
        %607 = vmatprep.subr.mxu0 0.0
        %608 = vmatpush1.msra.mxu0 0.0
        %609 = vmatprep.subr.mxu0 0.0
        %610 = vmatpush1.msra.mxu0 0.0
        %611 = vmatprep.subr.mxu0 0.0
        %612 = vmatpush1.msra.mxu0 0.0
        %613 = vmatprep.subr.mxu0 0.0
        %614 = vmatpush1.msra.mxu0 0.0
        %615 = vmatprep.subr.mxu0 0.0
        %616 = vmatpush1.msra.mxu0 0.0
        %617 = vmatprep.subr.mxu0 0.0
        %618 = vmatpush1.msra.mxu0 0.0
        %619 = vmatprep.subr.mxu0 0.0
        %620 = vmatpush1.msra.mxu0 0.0
        %621 = vmatprep.subr.mxu0 0.0
        %622 = vmatpush1.msra.mxu0 0.0
        %623 = vmatprep.subr.mxu0 0.0
        %624 = vmatpush1.msra.mxu0 0.0
        %625 = vmatprep.subr.mxu0 0.0
        %626 = vmatpush1.msra.mxu0 0.0
        %627 = vmatprep.subr.mxu0 0.0
        %628 = vmatpush1.msra.mxu0 0.0
        %629 = vmatprep.subr.mxu0 0.0
        %630 = vmatpush1.msra.mxu0 0.0
        %631 = vmatprep.subr.mxu0 0.0
        %632 = vmatpush1.msra.mxu0 0.0
        %633 = vmatprep.subr.mxu0 0.0
        %634 = vmatpush1.msra.mxu0 0.0
        %635 = vmatprep.mubr.f32.mxu0 0.0
        %636 = vmatmul.mubr.f32.gmra.mrb[0].mxu0 %v569
        %v637 = vpop.f32.mrb[0].mxu0
        %v638 = vadd.f32 0.0, %v637
        %v639 = vpop.f32.mrb[0].mxu0
        %640 = vdwg.mxu0
        %642 = vrot.lane.b32.xlu0 %v481, 64
        %v643 = vpop.permute.xlu0 %642
        %v645 = vmul.f32 %v477, %v643
        %v646 = vmul.f32 %v638, %v482
        %648 = vrot.lane.b32.xlu0 %v646, 64
        %v649 = vpop.permute.xlu0 %648
        %v651 = vadd.f32 %v645, %v649
        %653 = vrot.lane.b32.xlu0 %v651, 64
        %v654 = vpop.permute.xlu0 %653
        %vm655 = vcmask 130048
        %v657 = vsel %vm655, %v566, 0
        %v659 = vsel %vm655, %v654, 0
        %661 = vmatprep.subr.mxu0 0.0
        %662 = vmatpush1.xpose.msra.mxu0 %v659
        %663 = vmatprep.subr.mxu0 0.0
        %664 = vmatpush1.xpose.msra.mxu0 0.0
        %665 = vmatprep.subr.mxu0 0.0
        %666 = vmatpush1.xpose.msra.mxu0 0.0
        %667 = vmatprep.subr.mxu0 0.0
        %668 = vmatpush1.xpose.msra.mxu0 0.0
        %669 = vmatprep.subr.mxu0 0.0
        %670 = vmatpush1.xpose.msra.mxu0 0.0
        %671 = vmatprep.subr.mxu0 0.0
        %672 = vmatpush1.xpose.msra.mxu0 0.0
        %673 = vmatprep.subr.mxu0 0.0
        %674 = vmatpush1.xpose.msra.mxu0 0.0
        %675 = vmatprep.subr.mxu0 0.0
        %676 = vmatpush1.xpose.msra.mxu0 0.0
        %677 = vmatprep.subr.mxu0 0.0
        %678 = vmatpush1.xpose.msra.mxu0 0.0
        %679 = vmatprep.subr.mxu0 0.0
        %680 = vmatpush1.xpose.msra.mxu0 0.0
        %681 = vmatprep.subr.mxu0 0.0
        %682 = vmatpush1.xpose.msra.mxu0 0.0
        %683 = vmatprep.subr.mxu0 0.0
        %684 = vmatpush1.xpose.msra.mxu0 0.0
        %685 = vmatprep.subr.mxu0 0.0
        %686 = vmatpush1.xpose.msra.mxu0 0.0
        %687 = vmatprep.subr.mxu0 0.0
        %688 = vmatpush1.xpose.msra.mxu0 0.0
        %689 = vmatprep.subr.mxu0 0.0
        %690 = vmatpush1.xpose.msra.mxu0 0.0
        %691 = vmatprep.subr.mxu0 0.0
        %692 = vmatpush1.xpose.msra.mxu0 0.0
        %693 = vmatprep.subr.mxu0 0.0
        %694 = vmatpush1.xpose.msra.mxu0 0.0
        %695 = vmatprep.subr.mxu0 0.0
        %696 = vmatpush1.xpose.msra.mxu0 0.0
        %697 = vmatprep.subr.mxu0 0.0
        %698 = vmatpush1.xpose.msra.mxu0 0.0
        %699 = vmatprep.subr.mxu0 0.0
        %700 = vmatpush1.xpose.msra.mxu0 0.0
        %701 = vmatprep.subr.mxu0 0.0
        %702 = vmatpush1.xpose.msra.mxu0 0.0
        %703 = vmatprep.subr.mxu0 0.0
        %704 = vmatpush1.xpose.msra.mxu0 0.0
        %705 = vmatprep.subr.mxu0 0.0
        %706 = vmatpush1.xpose.msra.mxu0 0.0
        %707 = vmatprep.subr.mxu0 0.0
        %708 = vmatpush1.xpose.msra.mxu0 0.0
        %709 = vmatprep.subr.mxu0 0.0
        %710 = vmatpush1.xpose.msra.mxu0 0.0
        %711 = vmatprep.subr.mxu0 0.0
        %712 = vmatpush1.xpose.msra.mxu0 0.0
        %713 = vmatprep.subr.mxu0 0.0
        %714 = vmatpush1.xpose.msra.mxu0 0.0
        %715 = vmatprep.subr.mxu0 0.0
        %716 = vmatpush1.xpose.msra.mxu0 0.0
        %717 = vmatprep.subr.mxu0 0.0
        %718 = vmatpush1.xpose.msra.mxu0 0.0
        %719 = vmatprep.subr.mxu0 0.0
        %720 = vmatpush1.xpose.msra.mxu0 0.0
        %721 = vmatprep.subr.mxu0 0.0
        %722 = vmatpush1.xpose.msra.mxu0 0.0
        %723 = vmatprep.subr.mxu0 0.0
        %724 = vmatpush1.xpose.msra.mxu0 0.0
        %725 = vmatprep.mubr.f32.mxu0 0.0
        %726 = vmatmul.mubr.f32.gmra.mrb[0].mxu0 %v657
        %v727 = vpop.f32.mrb[0].mxu0
        %v728 = vadd.f32 0.0, %v727
        %v729 = vpop.f32.mrb[0].mxu0
        %730 = vdwg.mxu0
        %v731 = vmul.f32 %v728, 0.25
        %vm732 = vcmask 64512
        %v733 = vsel %vm732, %v731, -inf
        %734 = vmax.xlane.f32.xlu0 %v733
        %v735 = vpop.xlane.xlu0 %734
        %v736 = vsub.f32 %v731, %v735
        %v737 = vmul.f32 %v736, 1.442695
        %v738 = vpow.pop %v737
        %v739 = vsel %vm732, %v738, 0.0
        %740 = vadd.xlane.f32.xlu0 %v739
        %v741 = vpop.xlane.xlu0 %740
        %v742 = vrcp.pop %v741
        %v743 = vmul.f32 %v738, %v742
        %v745 = vsel %vm732, %v743, 0
        %747 = vmatprep.subr.mxu0 0.0
        %748 = vmatpush1.msra.mxu0 %v479
        %749 = vmatprep.subr.mxu0 0.0
        %750 = vmatpush1.msra.mxu0 0.0
        %751 = vmatprep.subr.mxu0 0.0
        %752 = vmatpush1.msra.mxu0 0.0
        %753 = vmatprep.subr.mxu0 0.0
        %754 = vmatpush1.msra.mxu0 0.0
        %755 = vmatprep.subr.mxu0 0.0
        %756 = vmatpush1.msra.mxu0 0.0
        %757 = vmatprep.subr.mxu0 0.0
        %758 = vmatpush1.msra.mxu0 0.0
        %759 = vmatprep.subr.mxu0 0.0
        %760 = vmatpush1.msra.mxu0 0.0
        %761 = vmatprep.subr.mxu0 0.0
        %762 = vmatpush1.msra.mxu0 0.0
        %763 = vmatprep.subr.mxu0 0.0
        %764 = vmatpush1.msra.mxu0 0.0
        %765 = vmatprep.subr.mxu0 0.0
        %766 = vmatpush1.msra.mxu0 0.0
        %767 = vmatprep.subr.mxu0 0.0
        %768 = vmatpush1.msra.mxu0 0.0
        %769 = vmatprep.subr.mxu0 0.0
        %770 = vmatpush1.msra.mxu0 0.0
        %771 = vmatprep.subr.mxu0 0.0
        %772 = vmatpush1.msra.mxu0 0.0
        %773 = vmatprep.subr.mxu0 0.0
        %774 = vmatpush1.msra.mxu0 0.0
        %775 = vmatprep.subr.mxu0 0.0
        %776 = vmatpush1.msra.mxu0 0.0
        %777 = vmatprep.subr.mxu0 0.0
        %778 = vmatpush1.msra.mxu0 0.0
        %779 = vmatprep.subr.mxu0 0.0
        %780 = vmatpush1.msra.mxu0 0.0
        %781 = vmatprep.subr.mxu0 0.0
        %782 = vmatpush1.msra.mxu0 0.0
        %783 = vmatprep.subr.mxu0 0.0
        %784 = vmatpush1.msra.mxu0 0.0
        %785 = vmatprep.subr.mxu0 0.0
        %786 = vmatpush1.msra.mxu0 0.0
        %787 = vmatprep.subr.mxu0 0.0
        %788 = vmatpush1.msra.mxu0 0.0
        %789 = vmatprep.subr.mxu0 0.0
        %790 = vmatpush1.msra.mxu0 0.0
        %791 = vmatprep.subr.mxu0 0.0
        %792 = vmatpush1.msra.mxu0 0.0
        %793 = vmatprep.subr.mxu0 0.0
        %794 = vmatpush1.msra.mxu0 0.0
        %795 = vmatprep.subr.mxu0 0.0
        %796 = vmatpush1.msra.mxu0 0.0
        %797 = vmatprep.subr.mxu0 0.0
        %798 = vmatpush1.msra.mxu0 0.0
        %799 = vmatprep.subr.mxu0 0.0
        %800 = vmatpush1.msra.mxu0 0.0
        %801 = vmatprep.subr.mxu0 0.0
        %802 = vmatpush1.msra.mxu0 0.0
        %803 = vmatprep.subr.mxu0 0.0
        %804 = vmatpush1.msra.mxu0 0.0
        %805 = vmatprep.subr.mxu0 0.0
        %806 = vmatpush1.msra.mxu0 0.0
        %807 = vmatprep.subr.mxu0 0.0
        %808 = vmatpush1.msra.mxu0 0.0
        %809 = vmatprep.subr.mxu0 0.0
        %810 = vmatpush1.msra.mxu0 0.0
        %811 = vmatprep.mubr.f32.mxu0 0.0
        %812 = vmatmul.mubr.f32.gmra.mrb[0].mxu0 %v745
        %v813 = vpop.f32.mrb[0].mxu0
        %v814 = vadd.f32 0.0, %v813
        %v815 = vpop.f32.mrb[0].mxu0
        %816 = vdwg.mxu0
        %817 = vrot.lane.b32.xlu0 %v566, 112
        %v818 = vpop.permute.xlu0 %817
        %819 = vrot.lane.b32.xlu0 %v651, 48
        %v820 = vpop.permute.xlu0 %819
        %v821 = vsel %vm655, %v818, 0
        %v823 = vsel %vm655, %v820, 0
        %825 = vmatprep.subr.mxu0 0.0
        %826 = vmatpush1.xpose.msra.mxu0 %v823
        %827 = vmatprep.subr.mxu0 0.0
        %828 = vmatpush1.xpose.msra.mxu0 0.0
        %829 = vmatprep.subr.mxu0 0.0
        %830 = vmatpush1.xpose.msra.mxu0 0.0
        %831 = vmatprep.subr.mxu0 0.0
        %832 = vmatpush1.xpose.msra.mxu0 0.0
        %833 = vmatprep.subr.mxu0 0.0
        %834 = vmatpush1.xpose.msra.mxu0 0.0
        %835 = vmatprep.subr.mxu0 0.0
        %836 = vmatpush1.xpose.msra.mxu0 0.0
        %837 = vmatprep.subr.mxu0 0.0
        %838 = vmatpush1.xpose.msra.mxu0 0.0
        %839 = vmatprep.subr.mxu0 0.0
        %840 = vmatpush1.xpose.msra.mxu0 0.0
        %841 = vmatprep.subr.mxu0 0.0
        %842 = vmatpush1.xpose.msra.mxu0 0.0
        %843 = vmatprep.subr.mxu0 0.0
        %844 = vmatpush1.xpose.msra.mxu0 0.0
        %845 = vmatprep.subr.mxu0 0.0
        %846 = vmatpush1.xpose.msra.mxu0 0.0
        %847 = vmatprep.subr.mxu0 0.0
        %848 = vmatpush1.xpose.msra.mxu0 0.0
        %849 = vmatprep.subr.mxu0 0.0
        %850 = vmatpush1.xpose.msra.mxu0 0.0
        %851 = vmatprep.subr.mxu0 0.0
        %852 = vmatpush1.xpose.msra.mxu0 0.0
        %853 = vmatprep.subr.mxu0 0.0
        %854 = vmatpush1.xpose.msra.mxu0 0.0
        %855 = vmatprep.subr.mxu0 0.0
        %856 = vmatpush1.xpose.msra.mxu0 0.0
        %857 = vmatprep.subr.mxu0 0.0
        %858 = vmatpush1.xpose.msra.mxu0 0.0
        %859 = vmatprep.subr.mxu0 0.0
        %860 = vmatpush1.xpose.msra.mxu0 0.0
        %861 = vmatprep.subr.mxu0 0.0
        %862 = vmatpush1.xpose.msra.mxu0 0.0
        %863 = vmatprep.subr.mxu0 0.0
        %864 = vmatpush1.xpose.msra.mxu0 0.0
        %865 = vmatprep.subr.mxu0 0.0
        %866 = vmatpush1.xpose.msra.mxu0 0.0
        %867 = vmatprep.subr.mxu0 0.0
        %868 = vmatpush1.xpose.msra.mxu0 0.0
        %869 = vmatprep.subr.mxu0 0.0
        %870 = vmatpush1.xpose.msra.mxu0 0.0
        %871 = vmatprep.subr.mxu0 0.0
        %872 = vmatpush1.xpose.msra.mxu0 0.0
        %873 = vmatprep.subr.mxu0 0.0
        %874 = vmatpush1.xpose.msra.mxu0 0.0
        %875 = vmatprep.subr.mxu0 0.0
        %876 = vmatpush1.xpose.msra.mxu0 0.0
        %877 = vmatprep.subr.mxu0 0.0
        %878 = vmatpush1.xpose.msra.mxu0 0.0
        %879 = vmatprep.subr.mxu0 0.0
        %880 = vmatpush1.xpose.msra.mxu0 0.0
        %881 = vmatprep.subr.mxu0 0.0
        %882 = vmatpush1.xpose.msra.mxu0 0.0
        %883 = vmatprep.subr.mxu0 0.0
        %884 = vmatpush1.xpose.msra.mxu0 0.0
        %885 = vmatprep.subr.mxu0 0.0
        %886 = vmatpush1.xpose.msra.mxu0 0.0
        %887 = vmatprep.subr.mxu0 0.0
        %888 = vmatpush1.xpose.msra.mxu0 0.0
        %889 = vmatprep.mubr.f32.mxu0 0.0
        %890 = vmatmul.mubr.f32.gmra.mrb[0].mxu0 %v821
        %v891 = vpop.f32.mrb[0].mxu0
        %v892 = vadd.f32 0.0, %v891
        %v893 = vpop.f32.mrb[0].mxu0
        %894 = vdwg.mxu0
        %v895 = vmul.f32 %v892, 0.25
        %v896 = vsel %vm732, %v895, -inf
        %897 = vmax.xlane.f32.xlu0 %v896
        %v898 = vpop.xlane.xlu0 %897
        %v899 = vsub.f32 %v895, %v898
        %v900 = vmul.f32 %v899, 1.442695
        %v901 = vpow.pop %v900
        %v902 = vsel %vm732, %v901, 0.0
        %903 = vadd.xlane.f32.xlu0 %v902
        %v904 = vpop.xlane.xlu0 %903
        %v905 = vrcp.pop %v904
        %v906 = vmul.f32 %v901, %v905
        %908 = vrot.lane.b32.xlu0 %v479, 112
        %v909 = vpop.permute.xlu0 %908
        %v912 = vsel %vm732, %v906, 0
        %914 = vmatprep.subr.mxu0 0.0
        %915 = vmatpush1.msra.mxu0 %v909
        %916 = vmatprep.subr.mxu0 0.0
        %917 = vmatpush1.msra.mxu0 0.0
        %918 = vmatprep.subr.mxu0 0.0
        %919 = vmatpush1.msra.mxu0 0.0
        %920 = vmatprep.subr.mxu0 0.0
        %921 = vmatpush1.msra.mxu0 0.0
        %922 = vmatprep.subr.mxu0 0.0
        %923 = vmatpush1.msra.mxu0 0.0
        %924 = vmatprep.subr.mxu0 0.0
        %925 = vmatpush1.msra.mxu0 0.0
        %926 = vmatprep.subr.mxu0 0.0
        %927 = vmatpush1.msra.mxu0 0.0
        %928 = vmatprep.subr.mxu0 0.0
        %929 = vmatpush1.msra.mxu0 0.0
        %930 = vmatprep.subr.mxu0 0.0
        %931 = vmatpush1.msra.mxu0 0.0
        %932 = vmatprep.subr.mxu0 0.0
        %933 = vmatpush1.msra.mxu0 0.0
        %934 = vmatprep.subr.mxu0 0.0
        %935 = vmatpush1.msra.mxu0 0.0
        %936 = vmatprep.subr.mxu0 0.0
        %937 = vmatpush1.msra.mxu0 0.0
        %938 = vmatprep.subr.mxu0 0.0
        %939 = vmatpush1.msra.mxu0 0.0
        %940 = vmatprep.subr.mxu0 0.0
        %941 = vmatpush1.msra.mxu0 0.0
        %942 = vmatprep.subr.mxu0 0.0
        %943 = vmatpush1.msra.mxu0 0.0
        %944 = vmatprep.subr.mxu0 0.0
        %945 = vmatpush1.msra.mxu0 0.0
        %946 = vmatprep.subr.mxu0 0.0
        %947 = vmatpush1.msra.mxu0 0.0
        %948 = vmatprep.subr.mxu0 0.0
        %949 = vmatpush1.msra.mxu0 0.0
        %950 = vmatprep.subr.mxu0 0.0
        %951 = vmatpush1.msra.mxu0 0.0
        %952 = vmatprep.subr.mxu0 0.0
        %953 = vmatpush1.msra.mxu0 0.0
        %954 = vmatprep.subr.mxu0 0.0
        %955 = vmatpush1.msra.mxu0 0.0
        %956 = vmatprep.subr.mxu0 0.0
        %957 = vmatpush1.msra.mxu0 0.0
        %958 = vmatprep.subr.mxu0 0.0
        %959 = vmatpush1.msra.mxu0 0.0
        %960 = vmatprep.subr.mxu0 0.0
        %961 = vmatpush1.msra.mxu0 0.0
        %962 = vmatprep.subr.mxu0 0.0
        %963 = vmatpush1.msra.mxu0 0.0
        %964 = vmatprep.subr.mxu0 0.0
        %965 = vmatpush1.msra.mxu0 0.0
        %966 = vmatprep.subr.mxu0 0.0
        %967 = vmatpush1.msra.mxu0 0.0
        %968 = vmatprep.subr.mxu0 0.0
        %969 = vmatpush1.msra.mxu0 0.0
        %970 = vmatprep.subr.mxu0 0.0
        %971 = vmatpush1.msra.mxu0 0.0
        %972 = vmatprep.subr.mxu0 0.0
        %973 = vmatpush1.msra.mxu0 0.0
        %974 = vmatprep.subr.mxu0 0.0
        %975 = vmatpush1.msra.mxu0 0.0
        %976 = vmatprep.subr.mxu0 0.0
        %977 = vmatpush1.msra.mxu0 0.0
        %978 = vmatprep.mubr.f32.mxu0 0.0
        %979 = vmatmul.mubr.f32.gmra.mrb[0].mxu0 %v912
        %v980 = vpop.f32.mrb[0].mxu0
        %v981 = vadd.f32 0.0, %v980
        %v982 = vpop.f32.mrb[0].mxu0
        %983 = vdwg.mxu0
        %984 = vrot.lane.b32.xlu0 %v566, 96
        %v985 = vpop.permute.xlu0 %984
        %986 = vrot.lane.b32.xlu0 %v651, 32
        %v987 = vpop.permute.xlu0 %986
        %v988 = vsel %vm655, %v985, 0
        %v990 = vsel %vm655, %v987, 0
        %992 = vmatprep.subr.mxu0 0.0
        %993 = vmatpush1.xpose.msra.mxu0 %v990
        %994 = vmatprep.subr.mxu0 0.0
        %995 = vmatpush1.xpose.msra.mxu0 0.0
        %996 = vmatprep.subr.mxu0 0.0
        %997 = vmatpush1.xpose.msra.mxu0 0.0
        %998 = vmatprep.subr.mxu0 0.0
        %999 = vmatpush1.xpose.msra.mxu0 0.0
        %1000 = vmatprep.subr.mxu0 0.0
        %1001 = vmatpush1.xpose.msra.mxu0 0.0
        %1002 = vmatprep.subr.mxu0 0.0
        %1003 = vmatpush1.xpose.msra.mxu0 0.0
        %1004 = vmatprep.subr.mxu0 0.0
        %1005 = vmatpush1.xpose.msra.mxu0 0.0
        %1006 = vmatprep.subr.mxu0 0.0
        %1007 = vmatpush1.xpose.msra.mxu0 0.0
        %1008 = vmatprep.subr.mxu0 0.0
        %1009 = vmatpush1.xpose.msra.mxu0 0.0
        %1010 = vmatprep.subr.mxu0 0.0
        %1011 = vmatpush1.xpose.msra.mxu0 0.0
        %1012 = vmatprep.subr.mxu0 0.0
        %1013 = vmatpush1.xpose.msra.mxu0 0.0
        %1014 = vmatprep.subr.mxu0 0.0
        %1015 = vmatpush1.xpose.msra.mxu0 0.0
        %1016 = vmatprep.subr.mxu0 0.0
        %1017 = vmatpush1.xpose.msra.mxu0 0.0
        %1018 = vmatprep.subr.mxu0 0.0
        %1019 = vmatpush1.xpose.msra.mxu0 0.0
        %1020 = vmatprep.subr.mxu0 0.0
        %1021 = vmatpush1.xpose.msra.mxu0 0.0
        %1022 = vmatprep.subr.mxu0 0.0
        %1023 = vmatpush1.xpose.msra.mxu0 0.0
        %1024 = vmatprep.subr.mxu0 0.0
        %1025 = vmatpush1.xpose.msra.mxu0 0.0
        %1026 = vmatprep.subr.mxu0 0.0
        %1027 = vmatpush1.xpose.msra.mxu0 0.0
        %1028 = vmatprep.subr.mxu0 0.0
        %1029 = vmatpush1.xpose.msra.mxu0 0.0
        %1030 = vmatprep.subr.mxu0 0.0
        %1031 = vmatpush1.xpose.msra.mxu0 0.0
        %1032 = vmatprep.subr.mxu0 0.0
        %1033 = vmatpush1.xpose.msra.mxu0 0.0
        %1034 = vmatprep.subr.mxu0 0.0
        %1035 = vmatpush1.xpose.msra.mxu0 0.0
        %1036 = vmatprep.subr.mxu0 0.0
        %1037 = vmatpush1.xpose.msra.mxu0 0.0
        %1038 = vmatprep.subr.mxu0 0.0
        %1039 = vmatpush1.xpose.msra.mxu0 0.0
        %1040 = vmatprep.subr.mxu0 0.0
        %1041 = vmatpush1.xpose.msra.mxu0 0.0
        %1042 = vmatprep.subr.mxu0 0.0
        %1043 = vmatpush1.xpose.msra.mxu0 0.0
        %1044 = vmatprep.subr.mxu0 0.0
        %1045 = vmatpush1.xpose.msra.mxu0 0.0
        %1046 = vmatprep.subr.mxu0 0.0
        %1047 = vmatpush1.xpose.msra.mxu0 0.0
        %1048 = vmatprep.subr.mxu0 0.0
        %1049 = vmatpush1.xpose.msra.mxu0 0.0
        %1050 = vmatprep.subr.mxu0 0.0
        %1051 = vmatpush1.xpose.msra.mxu0 0.0
        %1052 = vmatprep.subr.mxu0 0.0
        %1053 = vmatpush1.xpose.msra.mxu0 0.0
        %1054 = vmatprep.subr.mxu0 0.0
        %1055 = vmatpush1.xpose.msra.mxu0 0.0
        %1056 = vmatprep.mubr.f32.mxu0 0.0
        %1057 = vmatmul.mubr.f32.gmra.mrb[0].mxu0 %v988
        %v1058 = vpop.f32.mrb[0].mxu0
        %v1059 = vadd.f32 0.0, %v1058
        %v1060 = vpop.f32.mrb[0].mxu0
        %1061 = vdwg.mxu0
        %v1062 = vmul.f32 %v1059, 0.25
        %v1063 = vsel %vm732, %v1062, -inf
        %1064 = vmax.xlane.f32.xlu0 %v1063
        %v1065 = vpop.xlane.xlu0 %1064
        %v1066 = vsub.f32 %v1062, %v1065
        %v1067 = vmul.f32 %v1066, 1.442695
        %v1068 = vpow.pop %v1067
        %v1069 = vsel %vm732, %v1068, 0.0
        %1070 = vadd.xlane.f32.xlu0 %v1069
        %v1071 = vpop.xlane.xlu0 %1070
        %v1072 = vrcp.pop %v1071
        %v1073 = vmul.f32 %v1068, %v1072
        %1074 = vrot.lane.b32.xlu0 %v479, 96
        %v1075 = vpop.permute.xlu0 %1074
        %v1078 = vsel %vm732, %v1073, 0
        %1080 = vmatprep.subr.mxu0 0.0
        %1081 = vmatpush1.msra.mxu0 %v1075
        %1082 = vmatprep.subr.mxu0 0.0
        %1083 = vmatpush1.msra.mxu0 0.0
        %1084 = vmatprep.subr.mxu0 0.0
        %1085 = vmatpush1.msra.mxu0 0.0
        %1086 = vmatprep.subr.mxu0 0.0
        %1087 = vmatpush1.msra.mxu0 0.0
        %1088 = vmatprep.subr.mxu0 0.0
        %1089 = vmatpush1.msra.mxu0 0.0
        %1090 = vmatprep.subr.mxu0 0.0
        %1091 = vmatpush1.msra.mxu0 0.0
        %1092 = vmatprep.subr.mxu0 0.0
        %1093 = vmatpush1.msra.mxu0 0.0
        %1094 = vmatprep.subr.mxu0 0.0
        %1095 = vmatpush1.msra.mxu0 0.0
        %1096 = vmatprep.subr.mxu0 0.0
        %1097 = vmatpush1.msra.mxu0 0.0
        %1098 = vmatprep.subr.mxu0 0.0
        %1099 = vmatpush1.msra.mxu0 0.0
        %1100 = vmatprep.subr.mxu0 0.0
        %1101 = vmatpush1.msra.mxu0 0.0
        %1102 = vmatprep.subr.mxu0 0.0
        %1103 = vmatpush1.msra.mxu0 0.0
        %1104 = vmatprep.subr.mxu0 0.0
        %1105 = vmatpush1.msra.mxu0 0.0
        %1106 = vmatprep.subr.mxu0 0.0
        %1107 = vmatpush1.msra.mxu0 0.0
        %1108 = vmatprep.subr.mxu0 0.0
        %1109 = vmatpush1.msra.mxu0 0.0
        %1110 = vmatprep.subr.mxu0 0.0
        %1111 = vmatpush1.msra.mxu0 0.0
        %1112 = vmatprep.subr.mxu0 0.0
        %1113 = vmatpush1.msra.mxu0 0.0
        %1114 = vmatprep.subr.mxu0 0.0
        %1115 = vmatpush1.msra.mxu0 0.0
        %1116 = vmatprep.subr.mxu0 0.0
        %1117 = vmatpush1.msra.mxu0 0.0
        %1118 = vmatprep.subr.mxu0 0.0
        %1119 = vmatpush1.msra.mxu0 0.0
        %1120 = vmatprep.subr.mxu0 0.0
        %1121 = vmatpush1.msra.mxu0 0.0
        %1122 = vmatprep.subr.mxu0 0.0
        %1123 = vmatpush1.msra.mxu0 0.0
        %1124 = vmatprep.subr.mxu0 0.0
        %1125 = vmatpush1.msra.mxu0 0.0
        %1126 = vmatprep.subr.mxu0 0.0
        %1127 = vmatpush1.msra.mxu0 0.0
        %1128 = vmatprep.subr.mxu0 0.0
        %1129 = vmatpush1.msra.mxu0 0.0
        %1130 = vmatprep.subr.mxu0 0.0
        %1131 = vmatpush1.msra.mxu0 0.0
        %1132 = vmatprep.subr.mxu0 0.0
        %1133 = vmatpush1.msra.mxu0 0.0
        %1134 = vmatprep.subr.mxu0 0.0
        %1135 = vmatpush1.msra.mxu0 0.0
        %1136 = vmatprep.subr.mxu0 0.0
        %1137 = vmatpush1.msra.mxu0 0.0
        %1138 = vmatprep.subr.mxu0 0.0
        %1139 = vmatpush1.msra.mxu0 0.0
        %1140 = vmatprep.subr.mxu0 0.0
        %1141 = vmatpush1.msra.mxu0 0.0
        %1142 = vmatprep.subr.mxu0 0.0
        %1143 = vmatpush1.msra.mxu0 0.0
        %1144 = vmatprep.mubr.f32.mxu0 0.0
        %1145 = vmatmul.mubr.f32.gmra.mrb[0].mxu0 %v1078
        %v1146 = vpop.f32.mrb[0].mxu0
        %v1147 = vadd.f32 0.0, %v1146
        %v1148 = vpop.f32.mrb[0].mxu0
        %1149 = vdwg.mxu0
        %1150 = vrot.lane.b32.xlu0 %v566, 80
        %v1151 = vpop.permute.xlu0 %1150
        %1152 = vrot.lane.b32.xlu0 %v651, 16
        %v1153 = vpop.permute.xlu0 %1152
        %v1154 = vsel %vm655, %v1151, 0
        %v1156 = vsel %vm655, %v1153, 0
        %1158 = vmatprep.subr.mxu0 0.0
        %1159 = vmatpush1.xpose.msra.mxu0 %v1156
        %1160 = vmatprep.subr.mxu0 0.0
        %1161 = vmatpush1.xpose.msra.mxu0 0.0
        %1162 = vmatprep.subr.mxu0 0.0
        %1163 = vmatpush1.xpose.msra.mxu0 0.0
        %1164 = vmatprep.subr.mxu0 0.0
        %1165 = vmatpush1.xpose.msra.mxu0 0.0
        %1166 = vmatprep.subr.mxu0 0.0
        %1167 = vmatpush1.xpose.msra.mxu0 0.0
        %1168 = vmatprep.subr.mxu0 0.0
        %1169 = vmatpush1.xpose.msra.mxu0 0.0
        %1170 = vmatprep.subr.mxu0 0.0
        %1171 = vmatpush1.xpose.msra.mxu0 0.0
        %1172 = vmatprep.subr.mxu0 0.0
        %1173 = vmatpush1.xpose.msra.mxu0 0.0
        %1174 = vmatprep.subr.mxu0 0.0
        %1175 = vmatpush1.xpose.msra.mxu0 0.0
        %1176 = vmatprep.subr.mxu0 0.0
        %1177 = vmatpush1.xpose.msra.mxu0 0.0
        %1178 = vmatprep.subr.mxu0 0.0
        %1179 = vmatpush1.xpose.msra.mxu0 0.0
        %1180 = vmatprep.subr.mxu0 0.0
        %1181 = vmatpush1.xpose.msra.mxu0 0.0
        %1182 = vmatprep.subr.mxu0 0.0
        %1183 = vmatpush1.xpose.msra.mxu0 0.0
        %1184 = vmatprep.subr.mxu0 0.0
        %1185 = vmatpush1.xpose.msra.mxu0 0.0
        %1186 = vmatprep.subr.mxu0 0.0
        %1187 = vmatpush1.xpose.msra.mxu0 0.0
        %1188 = vmatprep.subr.mxu0 0.0
        %1189 = vmatpush1.xpose.msra.mxu0 0.0
        %1190 = vmatprep.subr.mxu0 0.0
        %1191 = vmatpush1.xpose.msra.mxu0 0.0
        %1192 = vmatprep.subr.mxu0 0.0
        %1193 = vmatpush1.xpose.msra.mxu0 0.0
        %1194 = vmatprep.subr.mxu0 0.0
        %1195 = vmatpush1.xpose.msra.mxu0 0.0
        %1196 = vmatprep.subr.mxu0 0.0
        %1197 = vmatpush1.xpose.msra.mxu0 0.0
        %1198 = vmatprep.subr.mxu0 0.0
        %1199 = vmatpush1.xpose.msra.mxu0 0.0
        %1200 = vmatprep.subr.mxu0 0.0
        %1201 = vmatpush1.xpose.msra.mxu0 0.0
        %1202 = vmatprep.subr.mxu0 0.0
        %1203 = vmatpush1.xpose.msra.mxu0 0.0
        %1204 = vmatprep.subr.mxu0 0.0
        %1205 = vmatpush1.xpose.msra.mxu0 0.0
        %1206 = vmatprep.subr.mxu0 0.0
        %1207 = vmatpush1.xpose.msra.mxu0 0.0
        %1208 = vmatprep.subr.mxu0 0.0
        %1209 = vmatpush1.xpose.msra.mxu0 0.0
        %1210 = vmatprep.subr.mxu0 0.0
        %1211 = vmatpush1.xpose.msra.mxu0 0.0
        %1212 = vmatprep.subr.mxu0 0.0
        %1213 = vmatpush1.xpose.msra.mxu0 0.0
        %1214 = vmatprep.subr.mxu0 0.0
        %1215 = vmatpush1.xpose.msra.mxu0 0.0
        %1216 = vmatprep.subr.mxu0 0.0
        %1217 = vmatpush1.xpose.msra.mxu0 0.0
        %1218 = vmatprep.subr.mxu0 0.0
        %1219 = vmatpush1.xpose.msra.mxu0 0.0
        %1220 = vmatprep.subr.mxu0 0.0
        %1221 = vmatpush1.xpose.msra.mxu0 0.0
        %1222 = vmatprep.mubr.f32.mxu0 0.0
        %1223 = vmatmul.mubr.f32.gmra.mrb[0].mxu0 %v1154
        %v1224 = vpop.f32.mrb[0].mxu0
        %v1225 = vadd.f32 0.0, %v1224
        %v1226 = vpop.f32.mrb[0].mxu0
        %1227 = vdwg.mxu0
        %v1228 = vmul.f32 %v1225, 0.25
        %v1229 = vsel %vm732, %v1228, -inf
        %1230 = vmax.xlane.f32.xlu0 %v1229
        %v1231 = vpop.xlane.xlu0 %1230
        %v1232 = vsub.f32 %v1228, %v1231
        %v1233 = vmul.f32 %v1232, 1.442695
        %v1234 = vpow.pop %v1233
        %v1235 = vsel %vm732, %v1234, 0.0
        %1236 = vadd.xlane.f32.xlu0 %v1235
        %v1237 = vpop.xlane.xlu0 %1236
        %v1238 = vrcp.pop %v1237
        %v1239 = vmul.f32 %v1234, %v1238
        %1240 = vrot.lane.b32.xlu0 %v479, 80
        %v1241 = vpop.permute.xlu0 %1240
        %v1244 = vsel %vm732, %v1239, 0
        %1246 = vmatprep.subr.mxu0 0.0
        %1247 = vmatpush1.msra.mxu0 %v1241
        %1248 = vmatprep.subr.mxu0 0.0
        %1249 = vmatpush1.msra.mxu0 0.0
        %1250 = vmatprep.subr.mxu0 0.0
        %1251 = vmatpush1.msra.mxu0 0.0
        %1252 = vmatprep.subr.mxu0 0.0
        %1253 = vmatpush1.msra.mxu0 0.0
        %1254 = vmatprep.subr.mxu0 0.0
        %1255 = vmatpush1.msra.mxu0 0.0
        %1256 = vmatprep.subr.mxu0 0.0
        %1257 = vmatpush1.msra.mxu0 0.0
        %1258 = vmatprep.subr.mxu0 0.0
        %1259 = vmatpush1.msra.mxu0 0.0
        %1260 = vmatprep.subr.mxu0 0.0
        %1261 = vmatpush1.msra.mxu0 0.0
        %1262 = vmatprep.subr.mxu0 0.0
        %1263 = vmatpush1.msra.mxu0 0.0
        %1264 = vmatprep.subr.mxu0 0.0
        %1265 = vmatpush1.msra.mxu0 0.0
        %1266 = vmatprep.subr.mxu0 0.0
        %1267 = vmatpush1.msra.mxu0 0.0
        %1268 = vmatprep.subr.mxu0 0.0
        %1269 = vmatpush1.msra.mxu0 0.0
        %1270 = vmatprep.subr.mxu0 0.0
        %1271 = vmatpush1.msra.mxu0 0.0
        %1272 = vmatprep.subr.mxu0 0.0
        %1273 = vmatpush1.msra.mxu0 0.0
        %1274 = vmatprep.subr.mxu0 0.0
        %1275 = vmatpush1.msra.mxu0 0.0
        %1276 = vmatprep.subr.mxu0 0.0
        %1277 = vmatpush1.msra.mxu0 0.0
        %1278 = vmatprep.subr.mxu0 0.0
        %1279 = vmatpush1.msra.mxu0 0.0
        %1280 = vmatprep.subr.mxu0 0.0
        %1281 = vmatpush1.msra.mxu0 0.0
        %1282 = vmatprep.subr.mxu0 0.0
        %1283 = vmatpush1.msra.mxu0 0.0
        %1284 = vmatprep.subr.mxu0 0.0
        %1285 = vmatpush1.msra.mxu0 0.0
        %1286 = vmatprep.subr.mxu0 0.0
        %1287 = vmatpush1.msra.mxu0 0.0
        %1288 = vmatprep.subr.mxu0 0.0
        %1289 = vmatpush1.msra.mxu0 0.0
        %1290 = vmatprep.subr.mxu0 0.0
        %1291 = vmatpush1.msra.mxu0 0.0
        %1292 = vmatprep.subr.mxu0 0.0
        %1293 = vmatpush1.msra.mxu0 0.0
        %1294 = vmatprep.subr.mxu0 0.0
        %1295 = vmatpush1.msra.mxu0 0.0
        %1296 = vmatprep.subr.mxu0 0.0
        %1297 = vmatpush1.msra.mxu0 0.0
        %1298 = vmatprep.subr.mxu0 0.0
        %1299 = vmatpush1.msra.mxu0 0.0
        %1300 = vmatprep.subr.mxu0 0.0
        %1301 = vmatpush1.msra.mxu0 0.0
        %1302 = vmatprep.subr.mxu0 0.0
        %1303 = vmatpush1.msra.mxu0 0.0
        %1304 = vmatprep.subr.mxu0 0.0
        %1305 = vmatpush1.msra.mxu0 0.0
        %1306 = vmatprep.subr.mxu0 0.0
        %1307 = vmatpush1.msra.mxu0 0.0
        %1308 = vmatprep.subr.mxu0 0.0
        %1309 = vmatpush1.msra.mxu0 0.0
        %1310 = vmatprep.mubr.f32.mxu0 0.0
        %1311 = vmatmul.mubr.f32.gmra.mrb[0].mxu0 %v1244
        %v1312 = vpop.f32.mrb[0].mxu0
        %v1313 = vadd.f32 0.0, %v1312
        %v1314 = vpop.f32.mrb[0].mxu0
        %1315 = vdwg.mxu0
        %1317 = vrot.lane.b32.xlu0 %v981, 16
        %v1318 = vpop.permute.xlu0 %1317
        %1321 = vrot.lane.b32.xlu0 %v1147, 32
        %v1322 = vpop.permute.xlu0 %1321
        %1325 = vrot.lane.b32.xlu0 %v1313, 48
        %v1326 = vpop.permute.xlu0 %1325
        %v1328 = vsel %vm655, %v814, %v1318
        %vm1329 = vcmask 261120
        %v1330 = vsel %vm1329, %v1328, %v1322
        %vm1331 = vcmask 392192
        %v1332 = vsel %vm1331, %v1330, %v1326
        %v1333 = vld [vmem:[#allocation7] sm:$0xff]
        %v1334 = vld [vmem:[#allocation7 + $0x8] sm:$0xff]
        %v1335 = vld [vmem:[#allocation7 + $0x10] sm:$0xff]
        %v1336 = vld [vmem:[#allocation7 + $0x18] sm:$0xff]
        %v1337 = vld [vmem:[#allocation7 + $0x20] sm:$0xff]
        %v1338 = vld [vmem:[#allocation7 + $0x28] sm:$0xff]
        %v1339 = vld [vmem:[#allocation7 + $0x30] sm:$0xff]
        %v1340 = vld [vmem:[#allocation7 + $0x38] sm:$0xff]
        %v1341 = vld [vmem:[#allocation8] sm:$0x1]
        %v1343 = vlaneseq
        %v1344 = vshrl.u32 %v1343, 7
        %v1345 = vsub.s32 0, %v1344
        %v1346 = vrot.slane %v1341, %v1345
        %v1349 = vsel %vm406, %v1332, 0
        %1351 = vmatprep.subr.mxu0 0.0
        %1352 = vmatpush1.msra.mxu0 %v1333
        %1353 = vmatprep.subr.mxu0 0.0
        %1354 = vmatpush1.msra.mxu0 %v1334
        %1355 = vmatprep.subr.mxu0 0.0
        %1356 = vmatpush1.msra.mxu0 %v1335
        %1357 = vmatprep.subr.mxu0 0.0
        %1358 = vmatpush1.msra.mxu0 %v1336
        %1359 = vmatprep.subr.mxu0 0.0
        %1360 = vmatpush1.msra.mxu0 %v1337
        %1361 = vmatprep.subr.mxu0 0.0
        %1362 = vmatpush1.msra.mxu0 %v1338
        %1363 = vmatprep.subr.mxu0 0.0
        %1364 = vmatpush1.msra.mxu0 %v1339
        %1365 = vmatprep.subr.mxu0 0.0
        %1366 = vmatpush1.msra.mxu0 %v1340
        %1367 = vmatprep.subr.mxu0 0.0
        %1368 = vmatpush1.msra.mxu0 0.0
        %1369 = vmatprep.subr.mxu0 0.0
        %1370 = vmatpush1.msra.mxu0 0.0
        %1371 = vmatprep.subr.mxu0 0.0
        %1372 = vmatpush1.msra.mxu0 0.0
        %1373 = vmatprep.subr.mxu0 0.0
        %1374 = vmatpush1.msra.mxu0 0.0
        %1375 = vmatprep.subr.mxu0 0.0
        %1376 = vmatpush1.msra.mxu0 0.0
        %1377 = vmatprep.subr.mxu0 0.0
        %1378 = vmatpush1.msra.mxu0 0.0
        %1379 = vmatprep.subr.mxu0 0.0
        %1380 = vmatpush1.msra.mxu0 0.0
        %1381 = vmatprep.subr.mxu0 0.0
        %1382 = vmatpush1.msra.mxu0 0.0
        %1383 = vmatprep.subr.mxu0 0.0
        %1384 = vmatpush1.msra.mxu0 0.0
        %1385 = vmatprep.subr.mxu0 0.0
        %1386 = vmatpush1.msra.mxu0 0.0
        %1387 = vmatprep.subr.mxu0 0.0
        %1388 = vmatpush1.msra.mxu0 0.0
        %1389 = vmatprep.subr.mxu0 0.0
        %1390 = vmatpush1.msra.mxu0 0.0
        %1391 = vmatprep.subr.mxu0 0.0
        %1392 = vmatpush1.msra.mxu0 0.0
        %1393 = vmatprep.subr.mxu0 0.0
        %1394 = vmatpush1.msra.mxu0 0.0
        %1395 = vmatprep.subr.mxu0 0.0
        %1396 = vmatpush1.msra.mxu0 0.0
        %1397 = vmatprep.subr.mxu0 0.0
        %1398 = vmatpush1.msra.mxu0 0.0
        %1399 = vmatprep.subr.mxu0 0.0
        %1400 = vmatpush1.msra.mxu0 0.0
        %1401 = vmatprep.subr.mxu0 0.0
        %1402 = vmatpush1.msra.mxu0 0.0
        %1403 = vmatprep.subr.mxu0 0.0
        %1404 = vmatpush1.msra.mxu0 0.0
        %1405 = vmatprep.subr.mxu0 0.0
        %1406 = vmatpush1.msra.mxu0 0.0
        %1407 = vmatprep.subr.mxu0 0.0
        %1408 = vmatpush1.msra.mxu0 0.0
        %1409 = vmatprep.subr.mxu0 0.0
        %1410 = vmatpush1.msra.mxu0 0.0
        %1411 = vmatprep.subr.mxu0 0.0
        %1412 = vmatpush1.msra.mxu0 0.0
        %1413 = vmatprep.subr.mxu0 0.0
        %1414 = vmatpush1.msra.mxu0 0.0
        %1415 = vmatprep.mubr.f32.mxu0 0.0
        %1416 = vmatmul.mubr.f32.gmra.mrb[0].mxu0 %v1349
        %v1417 = vpop.f32.mrb[0].mxu0
        %v1418 = vadd.f32 %v1346, %v1417
        %v1419 = vpop.f32.mrb[0].mxu0
        %1420 = vdwg.mxu0
        %1421 = vst.msk [vmem:[%s376] sm:$0xff] %vm406, %v1418
        %s1422 = sand.u32 %s208, 1
        %s1423 = scalar_lea.sflag [#allocation4], %s1422
        %s1424 = sand.u32 %s208, 1
        %s1425 = smul.addr %s1424, 8
        %s1426 = scalar_lea.vmem [#allocation11], %s1425
        // Predicated region
        $region73: #{tpu_custom_call.1} parent=51 // pred_check
          %p1427 = pneg %p218
        $region74: #{tpu_custom_call.1} parent=51 // pred_check_branch
          %1429 = sbr.rel (%p1427) target = $region76
        $region75: #{tpu_custom_call.1} parent=51 // pred_region
          %s1431 = ssub.s32 128, 128
          %1432 = vsyncadd %s1423, %s1431
          %s1433 = smul.addr %s27, 128
          %s1434 = scalar_lea.hbm %s8, %s1433
          %s1436 = sshll.u32 %s1426, 4
          %s1437 = int_to_ptr.vmem [resolvable:$true] %s1436
          %1439 = dma.vmem_to_hbm [thread:$0]  %s1437, 128, %s1434, %s1423
        $region76: #{tpu_custom_call.1} parent=51 // pred_fallthru
          _
      $region52: #{tpu_custom_call.1} parent=5 // pred_fallthru
        _
      %p1440 = scmp.le.s32.totalorder 2, %s22
      // Predicated region
      $region77: #{tpu_custom_call.1} parent=5 // pred_check
        %p1441 = pneg %p1440
      $region78: #{tpu_custom_call.1} parent=5 // pred_check_branch
        %1443 = sbr.rel (%p1441) target = $region80
      $region79: #{tpu_custom_call.1} parent=5 // pred_region
        %s1444 = ssub.s32 %s22, 2
        // Predicated region
        $region81: #{tpu_custom_call.1} parent=79 // pred_check
          %p1445 = pneg %p224
        $region82: #{tpu_custom_call.1} parent=79 // pred_check_branch
          %1447 = sbr.rel (%p1445) target = $region84
        $region83: #{tpu_custom_call.1} parent=79 // pred_region
          %s1448 = sand.u32 %s209, 1
          %s1449 = scalar_lea.sflag [#allocation4], %s1448
          %s1450 = sand.u32 %s209, 1
          %s1451 = smul.addr %s1450, 8
          %s1452 = scalar_lea.vmem [#allocation11], %s1451
          %1453 = dma.done %s1449, 128
        $region84: #{tpu_custom_call.1} parent=79 // pred_fallthru
          _
      $region80: #{tpu_custom_call.1} parent=5 // pred_fallthru
        _
    $region6: #{tpu_custom_call.1} parent=1 // loop_footer
      %s26 = sadd.s32 1, %s22
    $region7: #{tpu_custom_call.1} parent=1 // loop_footer_branch
      %21 = sbr.rel target = $region3
    $region8: #{tpu_custom_call.1} parent=1 // loop_exit
      _
    %1454 = vsyncpa [#allocation3], 1
    %s1455 = scalar_lea.sflag [#allocation3], 1
    %1456 = vsyncpa %s1455, 1
    %1457 = vsyncpa [#allocation6], 1
    %1458 = vsyncpa [#allocation9], 1
    %1459 = vsyncpa [#allocation4], 1
    %s1460 = scalar_lea.sflag [#allocation4], 1
    %1461 = vsyncpa %s1460, 1

</llo_original>
